<compile_context>
chip_gen: v7x
topology: tpu7x:2x2x1
jax: 0.10.0
libtpu: 0.0.40
codegen_flags: <defaults>
</compile_context>

<pallas_src>
import functools

import jax
import jax.numpy as jnp
from jax.experimental import pallas as pl
from jax.experimental.pallas import tpu as pltpu


def _gat2_fused_kernel(x_ref, adj_ref, adj_rep_ref, edst_ref, ecols_ref, bsel_ref,
                       w1_ref, a1s_ref, a1d_ref, b1_ref,
                       w2_ref, a2s_ref, a2d_ref, b2_ref,
                       o_ref, *, heads, negative_slope):
    """Fused conv1(H heads, concat) -> ELU -> conv2(1 head, mean) -> log_softmax."""
    f32 = jnp.float32
    x = x_ref[...]                # (N, F)
    adj = adj_ref[...]            # (N, N)   adj[i, j] = 1 iff edge j -> i

    # ---------------- layer 1: GATConv(F -> C1, heads=H, concat=True) ----------------
    h1 = jnp.dot(x, w1_ref[...], preferred_element_type=f32)         # (N, H*C1)

    # Block-diagonal neighbour features, used for both alpha_src and aggregation:
    #   h_blk[h*N + j, h'*C1 + c] = h1[j, h'*C1 + c] * (h == h')
    h_blk = jnp.concatenate([h1] * heads, axis=0) * bsel_ref[...]    # (H*N, H*C1)

    # Attention logits for all heads at once (no per-head loop).
    a_dst = jnp.dot(h1, a1d_ref[...], preferred_element_type=f32)    # (N, H)
    a_src = jax.lax.dot_general(a1s_ref[...], h_blk,
                                (((1,), (1,)), ((), ())),
                                preferred_element_type=f32)          # (1, H*N)
    #   e[i, h*N + j] = leaky_relu(a_dst[i, h] + a_src[j, h])
    e = jnp.dot(a_dst, edst_ref[...], preferred_element_type=f32) + a_src
    e = jnp.where(e > 0, e, negative_slope * e)                      # (N, H*N)

    # Masked softmax over source nodes j inside each head's lane block.
    # A per-dst-row global max is a valid shift for every head group (cheaper than
    # a segmented max; logits here are O(1) so no underflow concern).
    m = jnp.max(e, axis=1, keepdims=True)                            # (N, 1)
    p = jnp.exp(e - m) * adj_rep_ref[...]                            # (N, H*N)
    s = jax.lax.dot_general(p, edst_ref[...],
                            (((1,), (1,)), ((), ())),
                            preferred_element_type=f32)              # (N, H) group sums

    # Aggregate + normalize + bias + ELU: one wide MXU matmul, lane-dense (N, 64).
    out_un = jnp.dot(p, h_blk, preferred_element_type=f32)           # (N, H*C1)
    denom = jnp.dot(s, ecols_ref[...], preferred_element_type=f32)   # (N, H*C1)
    out1 = out_un * pl.reciprocal(denom, approx=True) + b1_ref[...]
    out1 = jnp.where(out1 > 0, out1, jnp.exp(out1) - 1.0)            # ELU

    # ---------------- layer 2: GATConv(H*C1 -> C, heads=1, concat=False) -------------
    h2 = jnp.dot(out1, w2_ref[...], preferred_element_type=f32)      # (N, C)
    a2_dst = jnp.dot(h2, a2d_ref[...], preferred_element_type=f32)   # (N, 1)
    a2_src = jax.lax.dot_general(a2s_ref[...], h2,
                                 (((1,), (1,)), ((), ())),
                                 preferred_element_type=f32)         # (1, N)
    e2 = a2_dst + a2_src                                             # (N, N)
    e2 = jnp.where(e2 > 0, e2, negative_slope * e2)
    m2 = jnp.max(e2, axis=1, keepdims=True)
    p2 = jnp.exp(e2 - m2) * adj                                      # (N, N)
    s2 = jnp.sum(p2, axis=1, keepdims=True)                          # (N, 1)
    out2 = jnp.dot(p2, h2, preferred_element_type=f32)               # (N, C)
    out2 = out2 * pl.reciprocal(s2, approx=True) + b2_ref[...]       # mean over 1 head

    # log_softmax over classes.
    mc = jnp.max(out2, axis=1, keepdims=True)
    z = out2 - mc
    o_ref[...] = (z - jnp.log(jnp.sum(jnp.exp(z), axis=1, keepdims=True))
                  ).astype(o_ref.dtype)


def gat_net_forward(x, adj, w1, a1_src, a1_dst, b1, w2, a2_src, a2_dst, b2,
                    *, heads, c1, negative_slope=0.2):
    """Wrapper: single pallas_call, whole (small) graph resident in VMEM, grid=()."""
    n, f = x.shape
    n_cls = w2.shape[1]
    f32 = jnp.float32
    x = x.astype(f32)
    adj = adj.astype(f32)

    # Host-built structural constants (head packing / expansion / selection).
    eye_h = jnp.eye(heads, dtype=f32)
    adj_rep = jnp.tile(adj, (1, heads))                               # (N, H*N)
    edst = jnp.kron(eye_h, jnp.ones((1, n), f32))                     # (H, H*N)
    ecols = jnp.kron(eye_h, jnp.ones((1, c1), f32))                   # (H, H*C1)
    bsel = jnp.kron(eye_h, jnp.ones((n, c1), f32))                    # (H*N, H*C1)

    # Attention-vector parameters repacked for whole-head matmuls.
    a1s_flat = a1_src.reshape(1, heads * c1).astype(f32)              # (1, H*C1)
    rows = jnp.arange(heads * c1)
    a1d_blk = jnp.zeros((heads * c1, heads), f32).at[
        rows, rows // c1].set(a1_dst.reshape(-1).astype(f32))         # (H*C1, H)

    b1 = b1.reshape(1, heads * c1).astype(f32)
    w1 = w1.astype(f32)
    w2 = w2.astype(f32)
    a2s = a2_src.reshape(1, n_cls).astype(f32)
    a2d = a2_dst.reshape(n_cls, 1).astype(f32)
    b2 = b2.reshape(1, n_cls).astype(f32)

    args = (x, adj, adj_rep, edst, ecols, bsel,
            w1, a1s_flat, a1d_blk, b1, w2, a2s, a2d, b2)

    # Rough cost hint for the XLA scheduler.
    hn, hc = heads * n, heads * c1
    flops = 2 * (n * f * hc + n * hc * heads + hc * hn + n * heads * hn
                 + n * hn * hc + n * heads * hc + n * hc * n_cls
                 + n * n_cls + n * n * n_cls)
    transcendentals = n * (hn + hc + n + 2 * n_cls)
    bytes_accessed = sum(int(a.size) * 4 for a in args) + n * n_cls * 4

    vmem = pl.BlockSpec(memory_space=pltpu.MemorySpace.VMEM)
    kernel = functools.partial(_gat2_fused_kernel, heads=heads,
                               negative_slope=negative_slope)
    return pl.pallas_call(
        kernel,
        out_shape=jax.ShapeDtypeStruct((n, n_cls), f32),
        in_specs=[vmem] * len(args),
        out_specs=vmem,
        cost_estimate=pl.CostEstimate(flops=flops,
                                      transcendentals=transcendentals,
                                      bytes_accessed=bytes_accessed),
    )(*args)


# ---------------------------------------------------------------------------
# Pure-JAX reference (same dense formulation) for a numerical sanity check.
# ---------------------------------------------------------------------------
def gat_layer_ref(x, w, a_src, a_dst, adj, bias, *, heads, out_ch, concat,
                  negative_slope=0.2, apply_elu=False, apply_log_softmax=False):
    n = x.shape[0]
    h = (x @ w).reshape(n, heads, out_ch)
    a_s = jnp.einsum('nhc,hc->nh', h, a_src)
    a_d = jnp.einsum('nhc,hc->nh', h, a_dst)
    e = a_d[:, None, :] + a_s[None, :, :]            # (N_dst, N_src, H)
    e = jnp.where(e > 0, e, negative_slope * e)
    e = jnp.where(adj[:, :, None] > 0, e, -1e30)
    att = jax.nn.softmax(e, axis=1)
    out = jnp.einsum('ijh,jhc->ihc', att, h)
    out = out.reshape(n, heads * out_ch) if concat else out.mean(axis=1)
    out = out + bias
    if apply_elu:
        out = jnp.where(out > 0, out, jnp.exp(out) - 1.0)
    if apply_log_softmax:
        out = jax.nn.log_softmax(out, axis=1)
    return out


def glorot(key, shape):
    fan_in, fan_out = shape[-2] if len(shape) > 1 else shape[-1], shape[-1]
    limit = (6.0 / (fan_in + fan_out)) ** 0.5
    return jax.random.uniform(key, shape, jnp.float32, -limit, limit)


if __name__ == "__main__":
    # Small synthetic "dataset": N nodes, F features, C classes, random edges.
    N, F, C = 32, 16, 4
    H1, C1 = 8, 8            # conv1: heads=8, out=8  -> concat dim 64
    H2 = 1                   # conv2: heads=1, out=C, concat=False
    E = 64

    key = jax.random.PRNGKey(0)
    kx, ks, kd, k1, k2, k3, k4, k5, k6, k7, k8 = jax.random.split(key, 11)

    x = jax.random.normal(kx, (N, F), jnp.float32)
    src = jax.random.randint(ks, (E,), 0, N)
    dst = jax.random.randint(kd, (E,), 0, N)

    # Dense adjacency with self-loops: adj[i, j] = 1 iff edge j -> i.
    adj = jnp.zeros((N, N), jnp.float32).at[dst, src].set(1.0)
    adj = adj.at[jnp.arange(N), jnp.arange(N)].set(1.0)

    # conv1 parameters
    w1 = glorot(k1, (F, H1 * C1))
    a1_src = glorot(k2, (H1, C1))
    a1_dst = glorot(k3, (H1, C1))
    b1 = 0.01 * jax.random.normal(k4, (H1 * C1,), jnp.float32)
    # conv2 parameters
    w2 = glorot(k5, (H1 * C1, H2 * C))
    a2_src = glorot(k6, (H2, C))
    a2_dst = glorot(k7, (H2, C))
    b2 = 0.01 * jax.random.normal(k8, (C,), jnp.float32)

    # ---- Pallas forward (single fused kernel) ----
    out = gat_net_forward(x, adj, w1, a1_src, a1_dst, b1, w2, a2_src, a2_dst, b2,
                          heads=H1, c1=C1)
    out = jax.block_until_ready(out)

    # ---- reference check ----
    r1 = gat_layer_ref(x, w1, a1_src, a1_dst, adj, b1,
                       heads=H1, out_ch=C1, concat=True, apply_elu=True)
    ref = gat_layer_ref(r1, w2, a2_src, a2_dst, adj, b2,
                        heads=H2, out_ch=C, concat=False, apply_log_softmax=True)
    assert out.shape == (N, C)
    # Tolerance covers pl.reciprocal(approx=True) in the softmax normalization.
    err = float(jnp.abs(out - ref).max())
    assert jnp.allclose(out, ref, atol=5e-3, rtol=5e-3), err

    print("KERNEL_OK")
</pallas_src>

<mosaic_0001>
module attributes {stable_mosaic.version = 11 : i64} {
  func.func @_gat2_fused_kernel(%arg0: memref<32x16xf32, #tpu.memory_space<vmem>>, %arg1: memref<32x32xf32, #tpu.memory_space<vmem>>, %arg2: memref<32x256xf32, #tpu.memory_space<vmem>>, %arg3: memref<8x256xf32, #tpu.memory_space<vmem>>, %arg4: memref<8x64xf32, #tpu.memory_space<vmem>>, %arg5: memref<256x64xf32, #tpu.memory_space<vmem>>, %arg6: memref<16x64xf32, #tpu.memory_space<vmem>>, %arg7: memref<1x64xf32, #tpu.memory_space<vmem>>, %arg8: memref<64x8xf32, #tpu.memory_space<vmem>>, %arg9: memref<1x64xf32, #tpu.memory_space<vmem>>, %arg10: memref<64x4xf32, #tpu.memory_space<vmem>>, %arg11: memref<1x4xf32, #tpu.memory_space<vmem>>, %arg12: memref<4x1xf32, #tpu.memory_space<vmem>>, %arg13: memref<1x4xf32, #tpu.memory_space<vmem>>, %arg14: memref<32x4xf32, #tpu.memory_space<vmem>>) attributes {dimension_semantics = [], scalar_prefetch = 0 : i64, scratch_operands = 0 : i64, tpu.core_type = #tpu.core_type<tc>} {
    %c0 = arith.constant 0 : index
    %c0_0 = arith.constant 0 : index
    %0 = vector.load %arg0[%c0, %c0_0] : memref<32x16xf32, #tpu.memory_space<vmem>>, vector<32x16xf32>
    %c0_1 = arith.constant 0 : index
    %c0_2 = arith.constant 0 : index
    %1 = vector.load %arg1[%c0_1, %c0_2] : memref<32x32xf32, #tpu.memory_space<vmem>>, vector<32x32xf32>
    %c0_3 = arith.constant 0 : index
    %c0_4 = arith.constant 0 : index
    %2 = vector.load %arg6[%c0_3, %c0_4] : memref<16x64xf32, #tpu.memory_space<vmem>>, vector<16x64xf32>
    %cst = arith.constant dense<0.000000e+00> : vector<32x64xf32>
    %3 = tpu.matmul %0, %2, %cst {dimension_numbers = #tpu.dot_dimension_numbers<[1], [0], [0], [1], [0, 0, 1, 1], [], []>} : vector<32x16xf32>, vector<16x64xf32>, vector<32x64xf32> -> vector<32x64xf32>
    %4 = tpu.concatenate %3, %3, %3, %3, %3, %3, %3, %3 in 0 : vector<32x64xf32>, vector<32x64xf32>, vector<32x64xf32>, vector<32x64xf32>, vector<32x64xf32>, vector<32x64xf32>, vector<32x64xf32>, vector<32x64xf32> -> vector<256x64xf32>
    %c0_5 = arith.constant 0 : index
    %c0_6 = arith.constant 0 : index
    %5 = vector.load %arg5[%c0_5, %c0_6] : memref<256x64xf32, #tpu.memory_space<vmem>>, vector<256x64xf32>
    %6 = arith.mulf %4, %5 : vector<256x64xf32>
    %c0_7 = arith.constant 0 : index
    %c0_8 = arith.constant 0 : index
    %7 = vector.load %arg8[%c0_7, %c0_8] : memref<64x8xf32, #tpu.memory_space<vmem>>, vector<64x8xf32>
    %cst_9 = arith.constant dense<0.000000e+00> : vector<32x8xf32>
    %8 = tpu.matmul %3, %7, %cst_9 {dimension_numbers = #tpu.dot_dimension_numbers<[1], [0], [0], [1], [0, 0, 1, 1], [], []>} : vector<32x64xf32>, vector<64x8xf32>, vector<32x8xf32> -> vector<32x8xf32>
    %c0_10 = arith.constant 0 : index
    %c0_11 = arith.constant 0 : index
    %9 = vector.load %arg7[%c0_10, %c0_11] : memref<1x64xf32, #tpu.memory_space<vmem>>, vector<1x64xf32>
    %cst_12 = arith.constant dense<0.000000e+00> : vector<1x256xf32>
    %10 = tpu.matmul %9, %6, %cst_12 {dimension_numbers = #tpu.dot_dimension_numbers<[1], [1], [0], [0], [0, 0, 1, 0], [], []>} : vector<1x64xf32>, vector<256x64xf32>, vector<1x256xf32> -> vector<1x256xf32>
    %c0_13 = arith.constant 0 : index
    %c0_14 = arith.constant 0 : index
    %11 = vector.load %arg3[%c0_13, %c0_14] : memref<8x256xf32, #tpu.memory_space<vmem>>, vector<8x256xf32>
    %cst_15 = arith.constant dense<0.000000e+00> : vector<32x256xf32>
    %12 = tpu.matmul %8, %11, %cst_15 {dimension_numbers = #tpu.dot_dimension_numbers<[1], [0], [0], [1], [0, 0, 1, 1], [], []>} : vector<32x8xf32>, vector<8x256xf32>, vector<32x256xf32> -> vector<32x256xf32>
    %13 = vector.broadcast %10 : vector<1x256xf32> to vector<32x256xf32>
    %14 = arith.addf %12, %13 : vector<32x256xf32>
    %cst_16 = arith.constant 0.000000e+00 : f32
    %15 = vector.broadcast %cst_16 : f32 to vector<32x256xf32>
    %16 = arith.cmpf ogt, %14, %15 : vector<32x256xf32>
    %cst_17 = arith.constant 2.000000e-01 : f32
    %17 = vector.broadcast %cst_17 : f32 to vector<32x256xf32>
    %18 = arith.mulf %17, %14 : vector<32x256xf32>
    %19 = arith.select %16, %14, %18 : vector<32x256xi1>, vector<32x256xf32>
    %cst_18 = arith.constant dense<0xFF800000> : vector<32xf32>
    %20 = vector.multi_reduction <maximumf>, %19, %cst_18 [1] : vector<32x256xf32> to vector<32xf32>
    %21 = vector.shape_cast %20 : vector<32xf32> to vector<32x1xf32>
    %22 = vector.broadcast %21 : vector<32x1xf32> to vector<32x256xf32>
    %23 = arith.subf %19, %22 : vector<32x256xf32>
    %24 = math.exp %23 : vector<32x256xf32>
    %c0_19 = arith.constant 0 : index
    %c0_20 = arith.constant 0 : index
    %25 = vector.load %arg2[%c0_19, %c0_20] : memref<32x256xf32, #tpu.memory_space<vmem>>, vector<32x256xf32>
    %26 = arith.mulf %24, %25 : vector<32x256xf32>
    %c0_21 = arith.constant 0 : index
    %c0_22 = arith.constant 0 : index
    %27 = vector.load %arg3[%c0_21, %c0_22] : memref<8x256xf32, #tpu.memory_space<vmem>>, vector<8x256xf32>
    %cst_23 = arith.constant dense<0.000000e+00> : vector<32x8xf32>
    %28 = tpu.matmul %26, %27, %cst_23 {dimension_numbers = #tpu.dot_dimension_numbers<[1], [1], [0], [0], [0, 0, 1, 0], [], []>} : vector<32x256xf32>, vector<8x256xf32>, vector<32x8xf32> -> vector<32x8xf32>
    %cst_24 = arith.constant dense<0.000000e+00> : vector<32x64xf32>
    %29 = tpu.matmul %26, %6, %cst_24 {dimension_numbers = #tpu.dot_dimension_numbers<[1], [0], [0], [1], [0, 0, 1, 1], [], []>} : vector<32x256xf32>, vector<256x64xf32>, vector<32x64xf32> -> vector<32x64xf32>
    %c0_25 = arith.constant 0 : index
    %c0_26 = arith.constant 0 : index
    %30 = vector.load %arg4[%c0_25, %c0_26] : memref<8x64xf32, #tpu.memory_space<vmem>>, vector<8x64xf32>
    %cst_27 = arith.constant dense<0.000000e+00> : vector<32x64xf32>
    %31 = tpu.matmul %28, %30, %cst_27 {dimension_numbers = #tpu.dot_dimension_numbers<[1], [0], [0], [1], [0, 0, 1, 1], [], []>} : vector<32x8xf32>, vector<8x64xf32>, vector<32x64xf32> -> vector<32x64xf32>
    %32 = tpu.reciprocal %31 {approx = true} : vector<32x64xf32> -> vector<32x64xf32>
    %33 = arith.mulf %29, %32 : vector<32x64xf32>
    %c0_28 = arith.constant 0 : index
    %c0_29 = arith.constant 0 : index
    %34 = vector.load %arg9[%c0_28, %c0_29] : memref<1x64xf32, #tpu.memory_space<vmem>>, vector<1x64xf32>
    %35 = vector.broadcast %34 : vector<1x64xf32> to vector<32x64xf32>
    %36 = arith.addf %33, %35 : vector<32x64xf32>
    %cst_30 = arith.constant 0.000000e+00 : f32
    %37 = vector.broadcast %cst_30 : f32 to vector<32x64xf32>
    %38 = arith.cmpf ogt, %36, %37 : vector<32x64xf32>
    %39 = math.exp %36 : vector<32x64xf32>
    %cst_31 = arith.constant 1.000000e+00 : f32
    %40 = vector.broadcast %cst_31 : f32 to vector<32x64xf32>
    %41 = arith.subf %39, %40 : vector<32x64xf32>
    %42 = arith.select %38, %36, %41 : vector<32x64xi1>, vector<32x64xf32>
    %c0_32 = arith.constant 0 : index
    %c0_33 = arith.constant 0 : index
    %43 = vector.load %arg10[%c0_32, %c0_33] : memref<64x4xf32, #tpu.memory_space<vmem>>, vector<64x4xf32>
    %cst_34 = arith.constant dense<0.000000e+00> : vector<32x4xf32>
    %44 = tpu.matmul %42, %43, %cst_34 {dimension_numbers = #tpu.dot_dimension_numbers<[1], [0], [0], [1], [0, 0, 1, 1], [], []>} : vector<32x64xf32>, vector<64x4xf32>, vector<32x4xf32> -> vector<32x4xf32>
    %c0_35 = arith.constant 0 : index
    %c0_36 = arith.constant 0 : index
    %45 = vector.load %arg12[%c0_35, %c0_36] : memref<4x1xf32, #tpu.memory_space<vmem>>, vector<4x1xf32>
    %cst_37 = arith.constant dense<0.000000e+00> : vector<32x1xf32>
    %46 = tpu.matmul %44, %45, %cst_37 {dimension_numbers = #tpu.dot_dimension_numbers<[1], [0], [0], [1], [0, 0, 1, 1], [], []>} : vector<32x4xf32>, vector<4x1xf32>, vector<32x1xf32> -> vector<32x1xf32>
    %c0_38 = arith.constant 0 : index
    %c0_39 = arith.constant 0 : index
    %47 = vector.load %arg11[%c0_38, %c0_39] : memref<1x4xf32, #tpu.memory_space<vmem>>, vector<1x4xf32>
    %cst_40 = arith.constant dense<0.000000e+00> : vector<1x32xf32>
    %48 = tpu.matmul %47, %44, %cst_40 {dimension_numbers = #tpu.dot_dimension_numbers<[1], [1], [0], [0], [0, 0, 1, 0], [], []>} : vector<1x4xf32>, vector<32x4xf32>, vector<1x32xf32> -> vector<1x32xf32>
    %49 = vector.broadcast %46 : vector<32x1xf32> to vector<32x32xf32>
    %50 = vector.broadcast %48 : vector<1x32xf32> to vector<32x32xf32>
    %51 = arith.addf %49, %50 : vector<32x32xf32>
    %cst_41 = arith.constant 0.000000e+00 : f32
    %52 = vector.broadcast %cst_41 : f32 to vector<32x32xf32>
    %53 = arith.cmpf ogt, %51, %52 : vector<32x32xf32>
    %cst_42 = arith.constant 2.000000e-01 : f32
    %54 = vector.broadcast %cst_42 : f32 to vector<32x32xf32>
    %55 = arith.mulf %54, %51 : vector<32x32xf32>
    %56 = arith.select %53, %51, %55 : vector<32x32xi1>, vector<32x32xf32>
    %cst_43 = arith.constant dense<0xFF800000> : vector<32xf32>
    %57 = vector.multi_reduction <maximumf>, %56, %cst_43 [1] : vector<32x32xf32> to vector<32xf32>
    %58 = vector.shape_cast %57 : vector<32xf32> to vector<32x1xf32>
    %59 = vector.broadcast %58 : vector<32x1xf32> to vector<32x32xf32>
    %60 = arith.subf %56, %59 : vector<32x32xf32>
    %61 = math.exp %60 : vector<32x32xf32>
    %62 = arith.mulf %61, %1 : vector<32x32xf32>
    %cst_44 = arith.constant dense<0.000000e+00> : vector<32xf32>
    %63 = vector.multi_reduction <add>, %62, %cst_44 [1] : vector<32x32xf32> to vector<32xf32>
    %64 = vector.shape_cast %63 : vector<32xf32> to vector<32x1xf32>
    %cst_45 = arith.constant dense<0.000000e+00> : vector<32x4xf32>
    %65 = tpu.matmul %62, %44, %cst_45 {dimension_numbers = #tpu.dot_dimension_numbers<[1], [0], [0], [1], [0, 0, 1, 1], [], []>} : vector<32x32xf32>, vector<32x4xf32>, vector<32x4xf32> -> vector<32x4xf32>
    %66 = tpu.reciprocal %64 {approx = true} : vector<32x1xf32> -> vector<32x1xf32>
    %67 = vector.broadcast %66 : vector<32x1xf32> to vector<32x4xf32>
    %68 = arith.mulf %65, %67 : vector<32x4xf32>
    %c0_46 = arith.constant 0 : index
    %c0_47 = arith.constant 0 : index
    %69 = vector.load %arg13[%c0_46, %c0_47] : memref<1x4xf32, #tpu.memory_space<vmem>>, vector<1x4xf32>
    %70 = vector.broadcast %69 : vector<1x4xf32> to vector<32x4xf32>
    %71 = arith.addf %68, %70 : vector<32x4xf32>
    %cst_48 = arith.constant dense<0xFF800000> : vector<32xf32>
    %72 = vector.multi_reduction <maximumf>, %71, %cst_48 [1] : vector<32x4xf32> to vector<32xf32>
    %73 = vector.shape_cast %72 : vector<32xf32> to vector<32x1xf32>
    %74 = vector.broadcast %73 : vector<32x1xf32> to vector<32x4xf32>
    %75 = arith.subf %71, %74 : vector<32x4xf32>
    %76 = math.exp %75 : vector<32x4xf32>
    %cst_49 = arith.constant dense<0.000000e+00> : vector<32xf32>
    %77 = vector.multi_reduction <add>, %76, %cst_49 [1] : vector<32x4xf32> to vector<32xf32>
    %78 = vector.shape_cast %77 : vector<32xf32> to vector<32x1xf32>
    %79 = math.log %78 : vector<32x1xf32>
    %80 = vector.broadcast %79 : vector<32x1xf32> to vector<32x4xf32>
    %81 = arith.subf %75, %80 : vector<32x4xf32>
    %c0_50 = arith.constant 0 : index
    %c0_51 = arith.constant 0 : index
    %82 = vector.load %arg14[%c0_50, %c0_51] : memref<32x4xf32, #tpu.memory_space<vmem>>, vector<32x4xf32>
    tpu.vector_store %arg14[%c0_50, %c0_51], %81 {strides = array<i32>} : memref<32x4xf32, #tpu.memory_space<vmem>>, vector<32x4xf32>,
    return
  }
}

</mosaic_0001>

<llo_original>
// kernel: tpu_custom_call.1
$region0: #{tpu_custom_call.1}
  #allocation0 [shape = 'u32[]', space=smem, size = 0x4, offset = 0x4, fixed_abs, tag = 'smem constant byte address 0x4 - core index']
  #allocation1 [shape = 'u32[144,128]{1,0:T(1,128)}', space=vmem, size = 0x12000, scoped, tag = 'internal scratch']
  %s0 = inlined_call_operand.vmem [shape: f32[32,16], index: 0, kind: input, shape index: {}]
  %s1 = inlined_call_operand.vmem [shape: f32[32,32], index: 1, kind: input, shape index: {}]
  %s2 = inlined_call_operand.vmem [shape: f32[32,256], index: 2, kind: input, shape index: {}]
  %s3 = inlined_call_operand.vmem [shape: f32[8,256], index: 3, kind: input, shape index: {}]
  %s4 = inlined_call_operand.vmem [shape: f32[8,64], index: 4, kind: input, shape index: {}]
  %s5 = inlined_call_operand.vmem [shape: f32[256,64], index: 5, kind: input, shape index: {}]
  %s6 = inlined_call_operand.vmem [shape: f32[16,64], index: 6, kind: input, shape index: {}]
  %s7 = inlined_call_operand.vmem [shape: f32[1,64], index: 7, kind: input, shape index: {}]
  %s8 = inlined_call_operand.vmem [shape: f32[64,8], index: 8, kind: input, shape index: {}]
  %s9 = inlined_call_operand.vmem [shape: f32[1,64], index: 9, kind: input, shape index: {}]
  %s10 = inlined_call_operand.vmem [shape: f32[64,4], index: 10, kind: input, shape index: {}]
  %s11 = inlined_call_operand.vmem [shape: f32[1,4], index: 11, kind: input, shape index: {}]
  %s12 = inlined_call_operand.vmem [shape: f32[4,1], index: 12, kind: input, shape index: {}]
  %s13 = inlined_call_operand.vmem [shape: f32[1,4], index: 13, kind: input, shape index: {}]
  %s14 = inlined_call_operand.vmem [shape: f32[32,4], index: 14, kind: output, shape index: {}]
  %s15 = sld [smem:[#allocation0]]
  $region66: #{tpu_custom_call.1} parent=0
    _
  %s17 = ssub.s32 1, %s15
  %s18 = scalar_select 0, %s17, %s15
  // Predicated region
  $region2: #{tpu_custom_call.1} parent=0 // pred_check
    _
  $region3: #{tpu_custom_call.1} parent=0 // pred_check_branch
    %20 = sbr.rel (0) target = $region5
  $region4: #{tpu_custom_call.1} parent=0 // pred_region
    _
  $region5: #{tpu_custom_call.1} parent=0 // pred_fallthru
    _
  // Predicated region
  $region6: #{tpu_custom_call.1} parent=0 // pred_check
    _
  $region7: #{tpu_custom_call.1} parent=0 // pred_check_branch
    %22 = sbr.rel (0) target = $region9
  $region8: #{tpu_custom_call.1} parent=0 // pred_region
    _
  $region9: #{tpu_custom_call.1} parent=0 // pred_fallthru
    _
  // Predicated region
  $region10: #{tpu_custom_call.1} parent=0 // pred_check
    _
  $region11: #{tpu_custom_call.1} parent=0 // pred_check_branch
    %24 = sbr.rel (0) target = $region13
  $region12: #{tpu_custom_call.1} parent=0 // pred_region
    _
  $region13: #{tpu_custom_call.1} parent=0 // pred_fallthru
    _
  // Predicated region
  $region14: #{tpu_custom_call.1} parent=0 // pred_check
    _
  $region15: #{tpu_custom_call.1} parent=0 // pred_check_branch
    %26 = sbr.rel (0) target = $region17
  $region16: #{tpu_custom_call.1} parent=0 // pred_region
    _
  $region17: #{tpu_custom_call.1} parent=0 // pred_fallthru
    _
  // Predicated region
  $region18: #{tpu_custom_call.1} parent=0 // pred_check
    _
  $region19: #{tpu_custom_call.1} parent=0 // pred_check_branch
    %28 = sbr.rel (0) target = $region21
  $region20: #{tpu_custom_call.1} parent=0 // pred_region
    _
  $region21: #{tpu_custom_call.1} parent=0 // pred_fallthru
    _
  // Predicated region
  $region22: #{tpu_custom_call.1} parent=0 // pred_check
    _
  $region23: #{tpu_custom_call.1} parent=0 // pred_check_branch
    %30 = sbr.rel (0) target = $region25
  $region24: #{tpu_custom_call.1} parent=0 // pred_region
    _
  $region25: #{tpu_custom_call.1} parent=0 // pred_fallthru
    _
  // Predicated region
  $region26: #{tpu_custom_call.1} parent=0 // pred_check
    _
  $region27: #{tpu_custom_call.1} parent=0 // pred_check_branch
    %32 = sbr.rel (0) target = $region29
  $region28: #{tpu_custom_call.1} parent=0 // pred_region
    _
  $region29: #{tpu_custom_call.1} parent=0 // pred_fallthru
    _
  // Predicated region
  $region30: #{tpu_custom_call.1} parent=0 // pred_check
    _
  $region31: #{tpu_custom_call.1} parent=0 // pred_check_branch
    %34 = sbr.rel (0) target = $region33
  $region32: #{tpu_custom_call.1} parent=0 // pred_region
    _
  $region33: #{tpu_custom_call.1} parent=0 // pred_fallthru
    _
  // Predicated region
  $region34: #{tpu_custom_call.1} parent=0 // pred_check
    _
  $region35: #{tpu_custom_call.1} parent=0 // pred_check_branch
    %36 = sbr.rel (0) target = $region37
  $region36: #{tpu_custom_call.1} parent=0 // pred_region
    _
  $region37: #{tpu_custom_call.1} parent=0 // pred_fallthru
    _
  // Predicated region
  $region38: #{tpu_custom_call.1} parent=0 // pred_check
    _
  $region39: #{tpu_custom_call.1} parent=0 // pred_check_branch
    %38 = sbr.rel (0) target = $region41
  $region40: #{tpu_custom_call.1} parent=0 // pred_region
    _
  $region41: #{tpu_custom_call.1} parent=0 // pred_fallthru
    _
  // Predicated region
  $region42: #{tpu_custom_call.1} parent=0 // pred_check
    _
  $region43: #{tpu_custom_call.1} parent=0 // pred_check_branch
    %40 = sbr.rel (0) target = $region45
  $region44: #{tpu_custom_call.1} parent=0 // pred_region
    _
  $region45: #{tpu_custom_call.1} parent=0 // pred_fallthru
    _
  // Predicated region
  $region46: #{tpu_custom_call.1} parent=0 // pred_check
    _
  $region47: #{tpu_custom_call.1} parent=0 // pred_check_branch
    %42 = sbr.rel (0) target = $region49
  $region48: #{tpu_custom_call.1} parent=0 // pred_region
    _
  $region49: #{tpu_custom_call.1} parent=0 // pred_fallthru
    _
  // Predicated region
  $region50: #{tpu_custom_call.1} parent=0 // pred_check
    _
  $region51: #{tpu_custom_call.1} parent=0 // pred_check_branch
    %44 = sbr.rel (0) target = $region53
  $region52: #{tpu_custom_call.1} parent=0 // pred_region
    _
  $region53: #{tpu_custom_call.1} parent=0 // pred_fallthru
    _
  // Predicated region
  $region54: #{tpu_custom_call.1} parent=0 // pred_check
    _
  $region55: #{tpu_custom_call.1} parent=0 // pred_check_branch
    %46 = sbr.rel (0) target = $region57
  $region56: #{tpu_custom_call.1} parent=0 // pred_region
    _
  $region57: #{tpu_custom_call.1} parent=0 // pred_fallthru
    _
  %v47 = vld [vmem:[%s0] sm:$0xff]
  %v48 = vld [vmem:[%s0 + $0x8] sm:$0xff]
  %v49 = vld [vmem:[%s0 + $0x10] sm:$0xff]
  %v50 = vld [vmem:[%s0 + $0x18] sm:$0xff]
  %v51 = vld [vmem:[%s1] sm:$0xff]
  %v52 = vld [vmem:[%s1 + $0x8] sm:$0xff]
  %v53 = vld [vmem:[%s1 + $0x10] sm:$0xff]
  %v54 = vld [vmem:[%s1 + $0x18] sm:$0xff]
  %v55 = vld [vmem:[%s6] sm:$0xff]
  %v56 = vld [vmem:[%s6 + $0x8] sm:$0xff]
  %vm57 = vcmask 130048
  %v59 = vsel %vm57, %v47, 0
  %v62 = vsel %vm57, %v48, 0
  %v65 = vsel %vm57, %v49, 0
  %v68 = vsel %vm57, %v50, 0
  %70 = vmatprep.subr.mxu0 0.0
  %71 = vmatpush1.msra.mxu0 %v55
  %72 = vmatprep.subr.mxu0 0.0
  %73 = vmatpush1.msra.mxu0 %v56
  %74 = vmatprep.subr.mxu0 0.0
  %75 = vmatpush1.msra.mxu0 0.0
  %76 = vmatprep.subr.mxu0 0.0
  %77 = vmatpush1.msra.mxu0 0.0
  %78 = vmatprep.subr.mxu0 0.0
  %79 = vmatpush1.msra.mxu0 0.0
  %80 = vmatprep.subr.mxu0 0.0
  %81 = vmatpush1.msra.mxu0 0.0
  %82 = vmatprep.subr.mxu0 0.0
  %83 = vmatpush1.msra.mxu0 0.0
  %84 = vmatprep.subr.mxu0 0.0
  %85 = vmatpush1.msra.mxu0 0.0
  %86 = vmatprep.subr.mxu0 0.0
  %87 = vmatpush1.msra.mxu0 0.0
  %88 = vmatprep.subr.mxu0 0.0
  %89 = vmatpush1.msra.mxu0 0.0
  %90 = vmatprep.subr.mxu0 0.0
  %91 = vmatpush1.msra.mxu0 0.0
  %92 = vmatprep.subr.mxu0 0.0
  %93 = vmatpush1.msra.mxu0 0.0
  %94 = vmatprep.subr.mxu0 0.0
  %95 = vmatpush1.msra.mxu0 0.0
  %96 = vmatprep.subr.mxu0 0.0
  %97 = vmatpush1.msra.mxu0 0.0
  %98 = vmatprep.subr.mxu0 0.0
  %99 = vmatpush1.msra.mxu0 0.0
  %100 = vmatprep.subr.mxu0 0.0
  %101 = vmatpush1.msra.mxu0 0.0
  %102 = vmatprep.subr.mxu0 0.0
  %103 = vmatpush1.msra.mxu0 0.0
  %104 = vmatprep.subr.mxu0 0.0
  %105 = vmatpush1.msra.mxu0 0.0
  %106 = vmatprep.subr.mxu0 0.0
  %107 = vmatpush1.msra.mxu0 0.0
  %108 = vmatprep.subr.mxu0 0.0
  %109 = vmatpush1.msra.mxu0 0.0
  %110 = vmatprep.subr.mxu0 0.0
  %111 = vmatpush1.msra.mxu0 0.0
  %112 = vmatprep.subr.mxu0 0.0
  %113 = vmatpush1.msra.mxu0 0.0
  %114 = vmatprep.subr.mxu0 0.0
  %115 = vmatpush1.msra.mxu0 0.0
  %116 = vmatprep.subr.mxu0 0.0
  %117 = vmatpush1.msra.mxu0 0.0
  %118 = vmatprep.subr.mxu0 0.0
  %119 = vmatpush1.msra.mxu0 0.0
  %120 = vmatprep.subr.mxu0 0.0
  %121 = vmatpush1.msra.mxu0 0.0
  %122 = vmatprep.subr.mxu0 0.0
  %123 = vmatpush1.msra.mxu0 0.0
  %124 = vmatprep.subr.mxu0 0.0
  %125 = vmatpush1.msra.mxu0 0.0
  %126 = vmatprep.subr.mxu0 0.0
  %127 = vmatpush1.msra.mxu0 0.0
  %128 = vmatprep.subr.mxu0 0.0
  %129 = vmatpush1.msra.mxu0 0.0
  %130 = vmatprep.subr.mxu0 0.0
  %131 = vmatpush1.msra.mxu0 0.0
  %132 = vmatprep.subr.mxu0 0.0
  %133 = vmatpush1.msra.mxu0 0.0
  %134 = vmatprep.mubr.f32.mxu0 0.0
  %135 = vmatmul.mubr.f32.gmra.mrb[0].mxu0 %v59
  %v136 = vpop.f32.mrb[0].mxu0
  %v137 = vadd.f32 0.0, %v136
  %v138 = vpop.f32.mrb[0].mxu0
  %139 = vmatprep.mubr.f32.mxu0 0.0
  %140 = vmatmul.mubr.f32.gmra.mrb[0].mxu0 %v62
  %v141 = vpop.f32.mrb[0].mxu0
  %v142 = vadd.f32 0.0, %v141
  %v143 = vpop.f32.mrb[0].mxu0
  %144 = vmatprep.mubr.f32.mxu0 0.0
  %145 = vmatmul.mubr.f32.gmra.mrb[0].mxu0 %v65
  %v146 = vpop.f32.mrb[0].mxu0
  %v147 = vadd.f32 0.0, %v146
  %v148 = vpop.f32.mrb[0].mxu0
  %149 = vmatprep.mubr.f32.mxu0 0.0
  %150 = vmatmul.mubr.f32.gmra.mrb[0].mxu0 %v68
  %v151 = vpop.f32.mrb[0].mxu0
  %v152 = vadd.f32 0.0, %v151
  %v153 = vpop.f32.mrb[0].mxu0
  %154 = vdwg.mxu0
  %v155 = vld [vmem:[%s5] sm:$0xff]
  %v156 = vld [vmem:[%s5 + $0x8] sm:$0xff]
  %v157 = vld [vmem:[%s5 + $0x10] sm:$0xff]
  %v158 = vld [vmem:[%s5 + $0x18] sm:$0xff]
  %v159 = vld [vmem:[%s5 + $0x20] sm:$0xff]
  %v160 = vld [vmem:[%s5 + $0x28] sm:$0xff]
  %v161 = vld [vmem:[%s5 + $0x30] sm:$0xff]
  %v162 = vld [vmem:[%s5 + $0x38] sm:$0xff]
  %v163 = vld [vmem:[%s5 + $0x40] sm:$0xff]
  %v164 = vld [vmem:[%s5 + $0x48] sm:$0xff]
  %v165 = vld [vmem:[%s5 + $0x50] sm:$0xff]
  %v166 = vld [vmem:[%s5 + $0x58] sm:$0xff]
  %v167 = vld [vmem:[%s5 + $0x60] sm:$0xff]
  %v168 = vld [vmem:[%s5 + $0x68] sm:$0xff]
  %v169 = vld [vmem:[%s5 + $0x70] sm:$0xff]
  %v170 = vld [vmem:[%s5 + $0x78] sm:$0xff]
  %v171 = vld [vmem:[%s5 + $0x80] sm:$0xff]
  %v172 = vld [vmem:[%s5 + $0x88] sm:$0xff]
  %v173 = vld [vmem:[%s5 + $0x90] sm:$0xff]
  %v174 = vld [vmem:[%s5 + $0x98] sm:$0xff]
  %v175 = vld [vmem:[%s5 + $0xa0] sm:$0xff]
  %v176 = vld [vmem:[%s5 + $0xa8] sm:$0xff]
  %v177 = vld [vmem:[%s5 + $0xb0] sm:$0xff]
  %v178 = vld [vmem:[%s5 + $0xb8] sm:$0xff]
  %v179 = vld [vmem:[%s5 + $0xc0] sm:$0xff]
  %v180 = vld [vmem:[%s5 + $0xc8] sm:$0xff]
  %v181 = vld [vmem:[%s5 + $0xd0] sm:$0xff]
  %v182 = vld [vmem:[%s5 + $0xd8] sm:$0xff]
  %v183 = vld [vmem:[%s5 + $0xe0] sm:$0xff]
  %v184 = vld [vmem:[%s5 + $0xe8] sm:$0xff]
  %v185 = vld [vmem:[%s5 + $0xf0] sm:$0xff]
  %v186 = vld [vmem:[%s5 + $0xf8] sm:$0xff]
  %v187 = vmul.f32 %v137, %v155
  %v188 = vmul.f32 %v142, %v156
  %v189 = vmul.f32 %v147, %v157
  %v190 = vmul.f32 %v152, %v158
  %v191 = vmul.f32 %v137, %v159
  %v192 = vmul.f32 %v142, %v160
  %v193 = vmul.f32 %v147, %v161
  %v194 = vmul.f32 %v152, %v162
  %v195 = vmul.f32 %v137, %v163
  %v196 = vmul.f32 %v142, %v164
  %v197 = vmul.f32 %v147, %v165
  %v198 = vmul.f32 %v152, %v166
  %v199 = vmul.f32 %v137, %v167
  %v200 = vmul.f32 %v142, %v168
  %v201 = vmul.f32 %v147, %v169
  %v202 = vmul.f32 %v152, %v170
  %v203 = vmul.f32 %v137, %v171
  %v204 = vmul.f32 %v142, %v172
  %v205 = vmul.f32 %v147, %v173
  %v206 = vmul.f32 %v152, %v174
  %v207 = vmul.f32 %v137, %v175
  %v208 = vmul.f32 %v142, %v176
  %v209 = vmul.f32 %v147, %v177
  %v210 = vmul.f32 %v152, %v178
  %v211 = vmul.f32 %v137, %v179
  %v212 = vmul.f32 %v142, %v180
  %v213 = vmul.f32 %v147, %v181
  %v214 = vmul.f32 %v152, %v182
  %v215 = vmul.f32 %v137, %v183
  %v216 = vmul.f32 %v142, %v184
  %v217 = vmul.f32 %v147, %v185
  %v218 = vmul.f32 %v152, %v186
  %v219 = vld [vmem:[%s8] sm:$0xff]
  %v220 = vld [vmem:[%s8 + $0x8] sm:$0xff]
  %v221 = vld [vmem:[%s8 + $0x10] sm:$0xff]
  %v222 = vld [vmem:[%s8 + $0x18] sm:$0xff]
  %v223 = vld [vmem:[%s8 + $0x20] sm:$0xff]
  %v224 = vld [vmem:[%s8 + $0x28] sm:$0xff]
  %v225 = vld [vmem:[%s8 + $0x30] sm:$0xff]
  %v226 = vld [vmem:[%s8 + $0x38] sm:$0xff]
  %vm227 = vcmask 523264
  %v229 = vsel %vm227, %v137, 0
  %v232 = vsel %vm227, %v142, 0
  %v235 = vsel %vm227, %v147, 0
  %v238 = vsel %vm227, %v152, 0
  %240 = vmatprep.subr.mxu0 0.0
  %241 = vmatpush1.msra.mxu0 %v219
  %242 = vmatprep.subr.mxu0 0.0
  %243 = vmatpush1.msra.mxu0 %v220
  %244 = vmatprep.subr.mxu0 0.0
  %245 = vmatpush1.msra.mxu0 %v221
  %246 = vmatprep.subr.mxu0 0.0
  %247 = vmatpush1.msra.mxu0 %v222
  %248 = vmatprep.subr.mxu0 0.0
  %249 = vmatpush1.msra.mxu0 %v223
  %250 = vmatprep.subr.mxu0 0.0
  %251 = vmatpush1.msra.mxu0 %v224
  %252 = vmatprep.subr.mxu0 0.0
  %253 = vmatpush1.msra.mxu0 %v225
  %254 = vmatprep.subr.mxu0 0.0
  %255 = vmatpush1.msra.mxu0 %v226
  %256 = vmatprep.subr.mxu0 0.0
  %257 = vmatpush1.msra.mxu0 0.0
  %258 = vmatprep.subr.mxu0 0.0
  %259 = vmatpush1.msra.mxu0 0.0
  %260 = vmatprep.subr.mxu0 0.0
  %261 = vmatpush1.msra.mxu0 0.0
  %262 = vmatprep.subr.mxu0 0.0
  %263 = vmatpush1.msra.mxu0 0.0
  %264 = vmatprep.subr.mxu0 0.0
  %265 = vmatpush1.msra.mxu0 0.0
  %266 = vmatprep.subr.mxu0 0.0
  %267 = vmatpush1.msra.mxu0 0.0
  %268 = vmatprep.subr.mxu0 0.0
  %269 = vmatpush1.msra.mxu0 0.0
  %270 = vmatprep.subr.mxu0 0.0
  %271 = vmatpush1.msra.mxu0 0.0
  %272 = vmatprep.subr.mxu0 0.0
  %273 = vmatpush1.msra.mxu0 0.0
  %274 = vmatprep.subr.mxu0 0.0
  %275 = vmatpush1.msra.mxu0 0.0
  %276 = vmatprep.subr.mxu0 0.0
  %277 = vmatpush1.msra.mxu0 0.0
  %278 = vmatprep.subr.mxu0 0.0
  %279 = vmatpush1.msra.mxu0 0.0
  %280 = vmatprep.subr.mxu0 0.0
  %281 = vmatpush1.msra.mxu0 0.0
  %282 = vmatprep.subr.mxu0 0.0
  %283 = vmatpush1.msra.mxu0 0.0
  %284 = vmatprep.subr.mxu0 0.0
  %285 = vmatpush1.msra.mxu0 0.0
  %286 = vmatprep.subr.mxu0 0.0
  %287 = vmatpush1.msra.mxu0 0.0
  %288 = vmatprep.subr.mxu0 0.0
  %289 = vmatpush1.msra.mxu0 0.0
  %290 = vmatprep.subr.mxu0 0.0
  %291 = vmatpush1.msra.mxu0 0.0
  %292 = vmatprep.subr.mxu0 0.0
  %293 = vmatpush1.msra.mxu0 0.0
  %294 = vmatprep.subr.mxu0 0.0
  %295 = vmatpush1.msra.mxu0 0.0
  %296 = vmatprep.subr.mxu0 0.0
  %297 = vmatpush1.msra.mxu0 0.0
  %298 = vmatprep.subr.mxu0 0.0
  %299 = vmatpush1.msra.mxu0 0.0
  %300 = vmatprep.subr.mxu0 0.0
  %301 = vmatpush1.msra.mxu0 0.0
  %302 = vmatprep.subr.mxu0 0.0
  %303 = vmatpush1.msra.mxu0 0.0
  %304 = vmatprep.mubr.f32.mxu0 0.0
  %305 = vmatmul.mubr.f32.gmra.mrb[0].mxu0 %v229
  %v306 = vpop.f32.mrb[0].mxu0
  %v307 = vadd.f32 0.0, %v306
  %v308 = vpop.f32.mrb[0].mxu0
  %309 = vmatprep.mubr.f32.mxu0 0.0
  %310 = vmatmul.mubr.f32.gmra.mrb[0].mxu0 %v232
  %v311 = vpop.f32.mrb[0].mxu0
  %v312 = vadd.f32 0.0, %v311
  %v313 = vpop.f32.mrb[0].mxu0
  %314 = vmatprep.mubr.f32.mxu0 0.0
  %315 = vmatmul.mubr.f32.gmra.mrb[0].mxu0 %v235
  %v316 = vpop.f32.mrb[0].mxu0
  %v317 = vadd.f32 0.0, %v316
  %v318 = vpop.f32.mrb[0].mxu0
  %319 = vmatprep.mubr.f32.mxu0 0.0
  %320 = vmatmul.mubr.f32.gmra.mrb[0].mxu0 %v238
  %v321 = vpop.f32.mrb[0].mxu0
  %v322 = vadd.f32 0.0, %v321
  %v323 = vpop.f32.mrb[0].mxu0
  %324 = vdwg.mxu0
  %v325 = vld [vmem:[%s7] sm:$0x1]
  %v327 = vsel %vm227, %v325, 0
  %v330 = vsel %vm227, %v187, 0
  %v333 = vsel %vm227, %v188, 0
  %v336 = vsel %vm227, %v189, 0
  %v339 = vsel %vm227, %v190, 0
  %v342 = vsel %vm227, %v191, 0
  %v345 = vsel %vm227, %v192, 0
  %v348 = vsel %vm227, %v193, 0
  %v351 = vsel %vm227, %v194, 0
  %v354 = vsel %vm227, %v195, 0
  %v357 = vsel %vm227, %v196, 0
  %v360 = vsel %vm227, %v197, 0
  %v363 = vsel %vm227, %v198, 0
  %v366 = vsel %vm227, %v199, 0
  %v369 = vsel %vm227, %v200, 0
  %v372 = vsel %vm227, %v201, 0
  %v375 = vsel %vm227, %v202, 0
  %v378 = vsel %vm227, %v203, 0
  %v381 = vsel %vm227, %v204, 0
  %v384 = vsel %vm227, %v205, 0
  %v387 = vsel %vm227, %v206, 0
  %v390 = vsel %vm227, %v207, 0
  %v393 = vsel %vm227, %v208, 0
  %v396 = vsel %vm227, %v209, 0
  %v399 = vsel %vm227, %v210, 0
  %v402 = vsel %vm227, %v211, 0
  %v405 = vsel %vm227, %v212, 0
  %v408 = vsel %vm227, %v213, 0
  %v411 = vsel %vm227, %v214, 0
  %v414 = vsel %vm227, %v215, 0
  %v417 = vsel %vm227, %v216, 0
  %v420 = vsel %vm227, %v217, 0
  %v423 = vsel %vm227, %v218, 0
  %425 = vmatprep.subr.mxu0 0.0
  %426 = vmatpush1.xpose.msra.mxu0 %v330
  %427 = vmatprep.subr.mxu0 0.0
  %428 = vmatpush1.xpose.msra.mxu0 %v333
  %429 = vmatprep.subr.mxu0 0.0
  %430 = vmatpush1.xpose.msra.mxu0 %v336
  %431 = vmatprep.subr.mxu0 0.0
  %432 = vmatpush1.xpose.msra.mxu0 %v339
  %433 = vmatprep.subr.mxu0 0.0
  %434 = vmatpush1.xpose.msra.mxu0 %v342
  %435 = vmatprep.subr.mxu0 0.0
  %436 = vmatpush1.xpose.msra.mxu0 %v345
  %437 = vmatprep.subr.mxu0 0.0
  %438 = vmatpush1.xpose.msra.mxu0 %v348
  %439 = vmatprep.subr.mxu0 0.0
  %440 = vmatpush1.xpose.msra.mxu0 %v351
  %441 = vmatprep.subr.mxu0 0.0
  %442 = vmatpush1.xpose.msra.mxu0 %v354
  %443 = vmatprep.subr.mxu0 0.0
  %444 = vmatpush1.xpose.msra.mxu0 %v357
  %445 = vmatprep.subr.mxu0 0.0
  %446 = vmatpush1.xpose.msra.mxu0 %v360
  %447 = vmatprep.subr.mxu0 0.0
  %448 = vmatpush1.xpose.msra.mxu0 %v363
  %449 = vmatprep.subr.mxu0 0.0
  %450 = vmatpush1.xpose.msra.mxu0 %v366
  %451 = vmatprep.subr.mxu0 0.0
  %452 = vmatpush1.xpose.msra.mxu0 %v369
  %453 = vmatprep.subr.mxu0 0.0
  %454 = vmatpush1.xpose.msra.mxu0 %v372
  %455 = vmatprep.subr.mxu0 0.0
  %456 = vmatpush1.xpose.msra.mxu0 %v375
  %457 = vmatprep.subr.mxu0 0.0
  %458 = vmatpush1.xpose.msra.mxu0 %v378
  %459 = vmatprep.subr.mxu0 0.0
  %460 = vmatpush1.xpose.msra.mxu0 %v381
  %461 = vmatprep.subr.mxu0 0.0
  %462 = vmatpush1.xpose.msra.mxu0 %v384
  %463 = vmatprep.subr.mxu0 0.0
  %464 = vmatpush1.xpose.msra.mxu0 %v387
  %465 = vmatprep.subr.mxu0 0.0
  %466 = vmatpush1.xpose.msra.mxu0 %v390
  %467 = vmatprep.subr.mxu0 0.0
  %468 = vmatpush1.xpose.msra.mxu0 %v393
  %469 = vmatprep.subr.mxu0 0.0
  %470 = vmatpush1.xpose.msra.mxu0 %v396
  %471 = vmatprep.subr.mxu0 0.0
  %472 = vmatpush1.xpose.msra.mxu0 %v399
  %473 = vmatprep.subr.mxu0 0.0
  %474 = vmatpush1.xpose.msra.mxu0 %v402
  %475 = vmatprep.subr.mxu0 0.0
  %476 = vmatpush1.xpose.msra.mxu0 %v405
  %477 = vmatprep.subr.mxu0 0.0
  %478 = vmatpush1.xpose.msra.mxu0 %v408
  %479 = vmatprep.subr.mxu0 0.0
  %480 = vmatpush1.xpose.msra.mxu0 %v411
  %481 = vmatprep.subr.mxu0 0.0
  %482 = vmatpush1.xpose.msra.mxu0 %v414
  %483 = vmatprep.subr.mxu0 0.0
  %484 = vmatpush1.xpose.msra.mxu0 %v417
  %485 = vmatprep.subr.mxu0 0.0
  %486 = vmatpush1.xpose.msra.mxu0 %v420
  %487 = vmatprep.subr.mxu0 0.0
  %488 = vmatpush1.xpose.msra.mxu0 %v423
  %489 = vmatprep.mubr.f32.mxu0 0.0
  %490 = vmatmul.mubr.f32.gmra.mrb[0].mxu0 %v327
  %v491 = vpop.f32.mrb[0].mxu0
  %v492 = vadd.f32 0.0, %v491
  %v493 = vpop.f32.mrb[0].mxu0
  %v494 = vadd.f32 0.0, %v493
  %495 = vdwg.mxu0
  %v496 = vld [vmem:[%s3] sm:$0xff]
  %v497 = vld [vmem:[%s3 + $0x8] sm:$0xff]
  %v498 = vlaneseq
  %v499 = vshrl.u32 %v498, 7
  %v500 = vsub.s32 0, %v499
  %v501 = vrot.slane %v492, %v500
  %v502 = vlaneseq
  %v503 = vshrl.u32 %v502, 7
  %v504 = vsub.s32 0, %v503
  %v505 = vrot.slane %v494, %v504
  %vm506 = vcmask 64512
  %v508 = vsel %vm506, %v307, 0
  %v511 = vsel %vm506, %v312, 0
  %v514 = vsel %vm506, %v317, 0
  %v517 = vsel %vm506, %v322, 0
  %519 = vmatprep.subr.mxu0 %v497
  %520 = vmatpush1.msra.mxu0 %v496
  %521 = vmatprep.subr.mxu0 0.0
  %522 = vmatpush1.msra.mxu0 0.0
  %523 = vmatprep.subr.mxu0 0.0
  %524 = vmatpush1.msra.mxu0 0.0
  %525 = vmatprep.subr.mxu0 0.0
  %526 = vmatpush1.msra.mxu0 0.0
  %527 = vmatprep.subr.mxu0 0.0
  %528 = vmatpush1.msra.mxu0 0.0
  %529 = vmatprep.subr.mxu0 0.0
  %530 = vmatpush1.msra.mxu0 0.0
  %531 = vmatprep.subr.mxu0 0.0
  %532 = vmatpush1.msra.mxu0 0.0
  %533 = vmatprep.subr.mxu0 0.0
  %534 = vmatpush1.msra.mxu0 0.0
  %535 = vmatprep.subr.mxu0 0.0
  %536 = vmatpush1.msra.mxu0 0.0
  %537 = vmatprep.subr.mxu0 0.0
  %538 = vmatpush1.msra.mxu0 0.0
  %539 = vmatprep.subr.mxu0 0.0
  %540 = vmatpush1.msra.mxu0 0.0
  %541 = vmatprep.subr.mxu0 0.0
  %542 = vmatpush1.msra.mxu0 0.0
  %543 = vmatprep.subr.mxu0 0.0
  %544 = vmatpush1.msra.mxu0 0.0
  %545 = vmatprep.subr.mxu0 0.0
  %546 = vmatpush1.msra.mxu0 0.0
  %547 = vmatprep.subr.mxu0 0.0
  %548 = vmatpush1.msra.mxu0 0.0
  %549 = vmatprep.subr.mxu0 0.0
  %550 = vmatpush1.msra.mxu0 0.0
  %551 = vmatprep.subr.mxu0 0.0
  %552 = vmatpush1.msra.mxu0 0.0
  %553 = vmatprep.subr.mxu0 0.0
  %554 = vmatpush1.msra.mxu0 0.0
  %555 = vmatprep.subr.mxu0 0.0
  %556 = vmatpush1.msra.mxu0 0.0
  %557 = vmatprep.subr.mxu0 0.0
  %558 = vmatpush1.msra.mxu0 0.0
  %559 = vmatprep.subr.mxu0 0.0
  %560 = vmatpush1.msra.mxu0 0.0
  %561 = vmatprep.subr.mxu0 0.0
  %562 = vmatpush1.msra.mxu0 0.0
  %563 = vmatprep.subr.mxu0 0.0
  %564 = vmatpush1.msra.mxu0 0.0
  %565 = vmatprep.subr.mxu0 0.0
  %566 = vmatpush1.msra.mxu0 0.0
  %567 = vmatprep.subr.mxu0 0.0
  %568 = vmatpush1.msra.mxu0 0.0
  %569 = vmatprep.subr.mxu0 0.0
  %570 = vmatpush1.msra.mxu0 0.0
  %571 = vmatprep.subr.mxu0 0.0
  %572 = vmatpush1.msra.mxu0 0.0
  %573 = vmatprep.subr.mxu0 0.0
  %574 = vmatpush1.msra.mxu0 0.0
  %575 = vmatprep.subr.mxu0 0.0
  %576 = vmatpush1.msra.mxu0 0.0
  %577 = vmatprep.subr.mxu0 0.0
  %578 = vmatpush1.msra.mxu0 0.0
  %579 = vmatprep.subr.mxu0 0.0
  %580 = vmatpush1.msra.mxu0 0.0
  %581 = vmatprep.subr.mxu0 0.0
  %582 = vmatpush1.msra.mxu0 0.0
  %583 = vmatprep.mubr.f32.mxu0 0.0
  %584 = vmatmul.mubr.f32.gmra.mrb[0].mxu0 %v508
  %v585 = vpop.f32.mrb[0].mxu0
  %v586 = vadd.f32 %v501, %v585
  %v587 = vpop.f32.mrb[0].mxu0
  %v588 = vadd.f32 %v505, %v587
  %589 = vmatprep.mubr.f32.mxu0 0.0
  %590 = vmatmul.mubr.f32.gmra.mrb[0].mxu0 %v511
  %v591 = vpop.f32.mrb[0].mxu0
  %v592 = vadd.f32 %v501, %v591
  %v593 = vpop.f32.mrb[0].mxu0
  %v594 = vadd.f32 %v505, %v593
  %595 = vmatprep.mubr.f32.mxu0 0.0
  %596 = vmatmul.mubr.f32.gmra.mrb[0].mxu0 %v514
  %v597 = vpop.f32.mrb[0].mxu0
  %v598 = vadd.f32 %v501, %v597
  %v599 = vpop.f32.mrb[0].mxu0
  %v600 = vadd.f32 %v505, %v599
  %601 = vmatprep.mubr.f32.mxu0 0.0
  %602 = vmatmul.mubr.f32.gmra.mrb[0].mxu0 %v517
  %v603 = vpop.f32.mrb[0].mxu0
  %v604 = vadd.f32 %v501, %v603
  %v605 = vpop.f32.mrb[0].mxu0
  %v606 = vadd.f32 %v505, %v605
  %607 = vdwg.mxu0
  %vm608 = vcmp.gt.f32.partialorder %v586, 0.0
  %vm609 = vcmp.gt.f32.partialorder %v588, 0.0
  %vm610 = vcmp.gt.f32.partialorder %v592, 0.0
  %vm611 = vcmp.gt.f32.partialorder %v594, 0.0
  %vm612 = vcmp.gt.f32.partialorder %v598, 0.0
  %vm613 = vcmp.gt.f32.partialorder %v600, 0.0
  %vm614 = vcmp.gt.f32.partialorder %v604, 0.0
  %vm615 = vcmp.gt.f32.partialorder %v606, 0.0
  %v616 = vmul.f32 %v586, 0.2
  %v617 = vmul.f32 %v588, 0.2
  %v618 = vmul.f32 %v592, 0.2
  %v619 = vmul.f32 %v594, 0.2
  %v620 = vmul.f32 %v598, 0.2
  %v621 = vmul.f32 %v600, 0.2
  %v622 = vmul.f32 %v604, 0.2
  %v623 = vmul.f32 %v606, 0.2
  %v624 = vsel %vm608, %v586, %v616
  %v625 = vsel %vm609, %v588, %v617
  %v626 = vsel %vm610, %v592, %v618
  %v627 = vsel %vm611, %v594, %v619
  %v628 = vsel %vm612, %v598, %v620
  %v629 = vsel %vm613, %v600, %v621
  %v630 = vsel %vm614, %v604, %v622
  %v631 = vsel %vm615, %v606, %v623
  %v632 = vmax.f32 %v624, %v625
  %633 = vmax.xlane.f32.xlu0 %v632
  %v634 = vpop.xlane.xlu0 %633
  %v635 = vmax.f32 %v626, %v627
  %636 = vmax.xlane.f32.xlu0 %v635
  %v637 = vpop.xlane.xlu0 %636
  %v638 = vmax.f32 %v628, %v629
  %639 = vmax.xlane.f32.xlu0 %v638
  %v640 = vpop.xlane.xlu0 %639
  %v641 = vmax.f32 %v630, %v631
  %642 = vmax.xlane.f32.xlu0 %v641
  %v643 = vpop.xlane.xlu0 %642
  %v644 = vsub.f32 %v624, %v634
  %v645 = vsub.f32 %v625, %v634
  %v646 = vsub.f32 %v626, %v637
  %v647 = vsub.f32 %v627, %v637
  %v648 = vsub.f32 %v628, %v640
  %v649 = vsub.f32 %v629, %v640
  %v650 = vsub.f32 %v630, %v643
  %v651 = vsub.f32 %v631, %v643
  %v652 = vmul.f32 %v644, 1.442695
  %v653 = vpow.pop %v652
  %v654 = vmul.f32 %v645, 1.442695
  %v655 = vpow.pop %v654
  %v656 = vmul.f32 %v646, 1.442695
  %v657 = vpow.pop %v656
  %v658 = vmul.f32 %v647, 1.442695
  %v659 = vpow.pop %v658
  %v660 = vmul.f32 %v648, 1.442695
  %v661 = vpow.pop %v660
  %v662 = vmul.f32 %v649, 1.442695
  %v663 = vpow.pop %v662
  %v664 = vmul.f32 %v650, 1.442695
  %v665 = vpow.pop %v664
  %v666 = vmul.f32 %v651, 1.442695
  %v667 = vpow.pop %v666
  %v668 = vld [vmem:[%s2] sm:$0xff]
  %v669 = vld [vmem:[%s2 + $0x8] sm:$0xff]
  %v670 = vld [vmem:[%s2 + $0x10] sm:$0xff]
  %v671 = vld [vmem:[%s2 + $0x18] sm:$0xff]
  %v672 = vld [vmem:[%s2 + $0x20] sm:$0xff]
  %v673 = vld [vmem:[%s2 + $0x28] sm:$0xff]
  %v674 = vld [vmem:[%s2 + $0x30] sm:$0xff]
  %v675 = vld [vmem:[%s2 + $0x38] sm:$0xff]
  %v676 = vmul.f32 %v653, %v668
  %v677 = vmul.f32 %v655, %v669
  %v678 = vmul.f32 %v657, %v670
  %v679 = vmul.f32 %v659, %v671
  %v680 = vmul.f32 %v661, %v672
  %v681 = vmul.f32 %v663, %v673
  %v682 = vmul.f32 %v665, %v674
  %v683 = vmul.f32 %v667, %v675
  %684 = vmatprep.subr.mxu0 %v497
  %685 = vmatpush1.xpose.msra.mxu0 %v496
  %686 = vmatprep.subr.mxu0 0.0
  %687 = vmatpush1.xpose.msra.mxu0 0.0
  %688 = vmatprep.subr.mxu0 0.0
  %689 = vmatpush1.xpose.msra.mxu0 0.0
  %690 = vmatprep.subr.mxu0 0.0
  %691 = vmatpush1.xpose.msra.mxu0 0.0
  %692 = vmatprep.subr.mxu0 0.0
  %693 = vmatpush1.xpose.msra.mxu0 0.0
  %694 = vmatprep.subr.mxu0 0.0
  %695 = vmatpush1.xpose.msra.mxu0 0.0
  %696 = vmatprep.subr.mxu0 0.0
  %697 = vmatpush1.xpose.msra.mxu0 0.0
  %698 = vmatprep.subr.mxu0 0.0
  %699 = vmatpush1.xpose.msra.mxu0 0.0
  %700 = vmatprep.subr.mxu0 0.0
  %701 = vmatpush1.xpose.msra.mxu0 0.0
  %702 = vmatprep.subr.mxu0 0.0
  %703 = vmatpush1.xpose.msra.mxu0 0.0
  %704 = vmatprep.subr.mxu0 0.0
  %705 = vmatpush1.xpose.msra.mxu0 0.0
  %706 = vmatprep.subr.mxu0 0.0
  %707 = vmatpush1.xpose.msra.mxu0 0.0
  %708 = vmatprep.subr.mxu0 0.0
  %709 = vmatpush1.xpose.msra.mxu0 0.0
  %710 = vmatprep.subr.mxu0 0.0
  %711 = vmatpush1.xpose.msra.mxu0 0.0
  %712 = vmatprep.subr.mxu0 0.0
  %713 = vmatpush1.xpose.msra.mxu0 0.0
  %714 = vmatprep.subr.mxu0 0.0
  %715 = vmatpush1.xpose.msra.mxu0 0.0
  %716 = vmatprep.subr.mxu0 0.0
  %717 = vmatpush1.xpose.msra.mxu0 0.0
  %718 = vmatprep.subr.mxu0 0.0
  %719 = vmatpush1.xpose.msra.mxu0 0.0
  %720 = vmatprep.subr.mxu0 0.0
  %721 = vmatpush1.xpose.msra.mxu0 0.0
  %722 = vmatprep.subr.mxu0 0.0
  %723 = vmatpush1.xpose.msra.mxu0 0.0
  %724 = vmatprep.subr.mxu0 0.0
  %725 = vmatpush1.xpose.msra.mxu0 0.0
  %726 = vmatprep.subr.mxu0 0.0
  %727 = vmatpush1.xpose.msra.mxu0 0.0
  %728 = vmatprep.subr.mxu0 0.0
  %729 = vmatpush1.xpose.msra.mxu0 0.0
  %730 = vmatprep.subr.mxu0 0.0
  %731 = vmatpush1.xpose.msra.mxu0 0.0
  %732 = vmatprep.subr.mxu0 0.0
  %733 = vmatpush1.xpose.msra.mxu0 0.0
  %734 = vmatprep.subr.mxu0 0.0
  %735 = vmatpush1.xpose.msra.mxu0 0.0
  %736 = vmatprep.subr.mxu0 0.0
  %737 = vmatpush1.xpose.msra.mxu0 0.0
  %738 = vmatprep.subr.mxu0 0.0
  %739 = vmatpush1.xpose.msra.mxu0 0.0
  %740 = vmatprep.subr.mxu0 0.0
  %741 = vmatpush1.xpose.msra.mxu0 0.0
  %742 = vmatprep.subr.mxu0 0.0
  %743 = vmatpush1.xpose.msra.mxu0 0.0
  %744 = vmatprep.subr.mxu0 0.0
  %745 = vmatpush1.xpose.msra.mxu0 0.0
  %746 = vmatprep.subr.mxu0 0.0
  %747 = vmatpush1.xpose.msra.mxu0 0.0
  %748 = vmatprep.mubr.f32.mxu0 %v677
  %749 = vmatmul.mubr.f32.gmra.mrb[0].mxu0 %v676
  %v750 = vpop.f32.mrb[0].mxu0
  %v751 = vadd.f32 0.0, %v750
  %v752 = vpop.f32.mrb[0].mxu0
  %753 = vmatprep.mubr.f32.mxu0 %v679
  %754 = vmatmul.mubr.f32.gmra.mrb[0].mxu0 %v678
  %v755 = vpop.f32.mrb[0].mxu0
  %v756 = vadd.f32 0.0, %v755
  %v757 = vpop.f32.mrb[0].mxu0
  %758 = vmatprep.mubr.f32.mxu0 %v681
  %759 = vmatmul.mubr.f32.gmra.mrb[0].mxu0 %v680
  %v760 = vpop.f32.mrb[0].mxu0
  %v761 = vadd.f32 0.0, %v760
  %v762 = vpop.f32.mrb[0].mxu0
  %763 = vmatprep.mubr.f32.mxu0 %v683
  %764 = vmatmul.mubr.f32.gmra.mrb[0].mxu0 %v682
  %v765 = vpop.f32.mrb[0].mxu0
  %v766 = vadd.f32 0.0, %v765
  %v767 = vpop.f32.mrb[0].mxu0
  %768 = vdwg.mxu0
  %769 = vmatprep.subr.mxu0 0.0
  %770 = vmatpush1.msra.mxu0 %v187
  %771 = vmatprep.subr.mxu0 0.0
  %772 = vmatpush1.msra.mxu0 %v188
  %773 = vmatprep.subr.mxu0 0.0
  %774 = vmatpush1.msra.mxu0 %v189
  %775 = vmatprep.subr.mxu0 0.0
  %776 = vmatpush1.msra.mxu0 %v190
  %777 = vmatprep.subr.mxu0 0.0
  %778 = vmatpush1.msra.mxu0 %v191
  %779 = vmatprep.subr.mxu0 0.0
  %780 = vmatpush1.msra.mxu0 %v192
  %781 = vmatprep.subr.mxu0 0.0
  %782 = vmatpush1.msra.mxu0 %v193
  %783 = vmatprep.subr.mxu0 0.0
  %784 = vmatpush1.msra.mxu0 %v194
  %785 = vmatprep.subr.mxu0 0.0
  %786 = vmatpush1.msra.mxu0 %v195
  %787 = vmatprep.subr.mxu0 0.0
  %788 = vmatpush1.msra.mxu0 %v196
  %789 = vmatprep.subr.mxu0 0.0
  %790 = vmatpush1.msra.mxu0 %v197
  %791 = vmatprep.subr.mxu0 0.0
  %792 = vmatpush1.msra.mxu0 %v198
  %793 = vmatprep.subr.mxu0 0.0
  %794 = vmatpush1.msra.mxu0 %v199
  %795 = vmatprep.subr.mxu0 0.0
  %796 = vmatpush1.msra.mxu0 %v200
  %797 = vmatprep.subr.mxu0 0.0
  %798 = vmatpush1.msra.mxu0 %v201
  %799 = vmatprep.subr.mxu0 0.0
  %800 = vmatpush1.msra.mxu0 %v202
  %801 = vmatprep.subr.mxu0 0.0
  %802 = vmatpush1.msra.mxu0 %v203
  %803 = vmatprep.subr.mxu0 0.0
  %804 = vmatpush1.msra.mxu0 %v204
  %805 = vmatprep.subr.mxu0 0.0
  %806 = vmatpush1.msra.mxu0 %v205
  %807 = vmatprep.subr.mxu0 0.0
  %808 = vmatpush1.msra.mxu0 %v206
  %809 = vmatprep.subr.mxu0 0.0
  %810 = vmatpush1.msra.mxu0 %v207
  %811 = vmatprep.subr.mxu0 0.0
  %812 = vmatpush1.msra.mxu0 %v208
  %813 = vmatprep.subr.mxu0 0.0
  %814 = vmatpush1.msra.mxu0 %v209
  %815 = vmatprep.subr.mxu0 0.0
  %816 = vmatpush1.msra.mxu0 %v210
  %817 = vmatprep.subr.mxu0 0.0
  %818 = vmatpush1.msra.mxu0 %v211
  %819 = vmatprep.subr.mxu0 0.0
  %820 = vmatpush1.msra.mxu0 %v212
  %821 = vmatprep.subr.mxu0 0.0
  %822 = vmatpush1.msra.mxu0 %v213
  %823 = vmatprep.subr.mxu0 0.0
  %824 = vmatpush1.msra.mxu0 %v214
  %825 = vmatprep.subr.mxu0 0.0
  %826 = vmatpush1.msra.mxu0 %v215
  %827 = vmatprep.subr.mxu0 0.0
  %828 = vmatpush1.msra.mxu0 %v216
  %829 = vmatprep.subr.mxu0 0.0
  %830 = vmatpush1.msra.mxu0 %v217
  %831 = vmatprep.subr.mxu0 0.0
  %832 = vmatpush1.msra.mxu0 %v218
  %833 = vmatprep.mubr.f32.mxu0 %v677
  %834 = vmatmul.mubr.f32.gmra.mrb[0].mxu0 %v676
  %v835 = vpop.f32.mrb[0].mxu0
  %v836 = vadd.f32 0.0, %v835
  %v837 = vpop.f32.mrb[0].mxu0
  %838 = vmatprep.mubr.f32.mxu0 %v679
  %839 = vmatmul.mubr.f32.gmra.mrb[0].mxu0 %v678
  %v840 = vpop.f32.mrb[0].mxu0
  %v841 = vadd.f32 0.0, %v840
  %v842 = vpop.f32.mrb[0].mxu0
  %843 = vmatprep.mubr.f32.mxu0 %v681
  %844 = vmatmul.mubr.f32.gmra.mrb[0].mxu0 %v680
  %v845 = vpop.f32.mrb[0].mxu0
  %v846 = vadd.f32 0.0, %v845
  %v847 = vpop.f32.mrb[0].mxu0
  %848 = vmatprep.mubr.f32.mxu0 %v683
  %849 = vmatmul.mubr.f32.gmra.mrb[0].mxu0 %v682
  %v850 = vpop.f32.mrb[0].mxu0
  %v851 = vadd.f32 0.0, %v850
  %v852 = vpop.f32.mrb[0].mxu0
  %853 = vdwg.mxu0
  %v854 = vld [vmem:[%s4] sm:$0xff]
  %v856 = vsel %vm506, %v751, 0
  %v859 = vsel %vm506, %v756, 0
  %v862 = vsel %vm506, %v761, 0
  %v865 = vsel %vm506, %v766, 0
  %867 = vmatprep.subr.mxu0 0.0
  %868 = vmatpush1.msra.mxu0 %v854
  %869 = vmatprep.subr.mxu0 0.0
  %870 = vmatpush1.msra.mxu0 0.0
  %871 = vmatprep.subr.mxu0 0.0
  %872 = vmatpush1.msra.mxu0 0.0
  %873 = vmatprep.subr.mxu0 0.0
  %874 = vmatpush1.msra.mxu0 0.0
  %875 = vmatprep.subr.mxu0 0.0
  %876 = vmatpush1.msra.mxu0 0.0
  %877 = vmatprep.subr.mxu0 0.0
  %878 = vmatpush1.msra.mxu0 0.0
  %879 = vmatprep.subr.mxu0 0.0
  %880 = vmatpush1.msra.mxu0 0.0
  %881 = vmatprep.subr.mxu0 0.0
  %882 = vmatpush1.msra.mxu0 0.0
  %883 = vmatprep.subr.mxu0 0.0
  %884 = vmatpush1.msra.mxu0 0.0
  %885 = vmatprep.subr.mxu0 0.0
  %886 = vmatpush1.msra.mxu0 0.0
  %887 = vmatprep.subr.mxu0 0.0
  %888 = vmatpush1.msra.mxu0 0.0
  %889 = vmatprep.subr.mxu0 0.0
  %890 = vmatpush1.msra.mxu0 0.0
  %891 = vmatprep.subr.mxu0 0.0
  %892 = vmatpush1.msra.mxu0 0.0
  %893 = vmatprep.subr.mxu0 0.0
  %894 = vmatpush1.msra.mxu0 0.0
  %895 = vmatprep.subr.mxu0 0.0
  %896 = vmatpush1.msra.mxu0 0.0
  %897 = vmatprep.subr.mxu0 0.0
  %898 = vmatpush1.msra.mxu0 0.0
  %899 = vmatprep.subr.mxu0 0.0
  %900 = vmatpush1.msra.mxu0 0.0
  %901 = vmatprep.subr.mxu0 0.0
  %902 = vmatpush1.msra.mxu0 0.0
  %903 = vmatprep.subr.mxu0 0.0
  %904 = vmatpush1.msra.mxu0 0.0
  %905 = vmatprep.subr.mxu0 0.0
  %906 = vmatpush1.msra.mxu0 0.0
  %907 = vmatprep.subr.mxu0 0.0
  %908 = vmatpush1.msra.mxu0 0.0
  %909 = vmatprep.subr.mxu0 0.0
  %910 = vmatpush1.msra.mxu0 0.0
  %911 = vmatprep.subr.mxu0 0.0
  %912 = vmatpush1.msra.mxu0 0.0
  %913 = vmatprep.subr.mxu0 0.0
  %914 = vmatpush1.msra.mxu0 0.0
  %915 = vmatprep.subr.mxu0 0.0
  %916 = vmatpush1.msra.mxu0 0.0
  %917 = vmatprep.subr.mxu0 0.0
  %918 = vmatpush1.msra.mxu0 0.0
  %919 = vmatprep.subr.mxu0 0.0
  %920 = vmatpush1.msra.mxu0 0.0
  %921 = vmatprep.subr.mxu0 0.0
  %922 = vmatpush1.msra.mxu0 0.0
  %923 = vmatprep.subr.mxu0 0.0
  %924 = vmatpush1.msra.mxu0 0.0
  %925 = vmatprep.subr.mxu0 0.0
  %926 = vmatpush1.msra.mxu0 0.0
  %927 = vmatprep.subr.mxu0 0.0
  %928 = vmatpush1.msra.mxu0 0.0
  %929 = vmatprep.subr.mxu0 0.0
  %930 = vmatpush1.msra.mxu0 0.0
  %931 = vmatprep.mubr.f32.mxu0 0.0
  %932 = vmatmul.mubr.f32.gmra.mrb[0].mxu0 %v856
  %v933 = vpop.f32.mrb[0].mxu0
  %v934 = vadd.f32 0.0, %v933
  %v935 = vpop.f32.mrb[0].mxu0
  %936 = vmatprep.mubr.f32.mxu0 0.0
  %937 = vmatmul.mubr.f32.gmra.mrb[0].mxu0 %v859
  %v938 = vpop.f32.mrb[0].mxu0
  %v939 = vadd.f32 0.0, %v938
  %v940 = vpop.f32.mrb[0].mxu0
  %941 = vmatprep.mubr.f32.mxu0 0.0
  %942 = vmatmul.mubr.f32.gmra.mrb[0].mxu0 %v862
  %v943 = vpop.f32.mrb[0].mxu0
  %v944 = vadd.f32 0.0, %v943
  %v945 = vpop.f32.mrb[0].mxu0
  %946 = vmatprep.mubr.f32.mxu0 0.0
  %947 = vmatmul.mubr.f32.gmra.mrb[0].mxu0 %v865
  %v948 = vpop.f32.mrb[0].mxu0
  %v949 = vadd.f32 0.0, %v948
  %v950 = vpop.f32.mrb[0].mxu0
  %951 = vdwg.mxu0
  %v952 = vrcp.pop %v934
  %v953 = vrcp.pop %v939
  %v954 = vrcp.pop %v944
  %v955 = vrcp.pop %v949
  %v956 = vmul.f32 %v836, %v952
  %v957 = vmul.f32 %v841, %v953
  %v958 = vmul.f32 %v846, %v954
  %v959 = vmul.f32 %v851, %v955
  %v960 = vld [vmem:[%s9] sm:$0x1]
  %v962 = vlaneseq
  %v963 = vshrl.u32 %v962, 7
  %v964 = vsub.s32 0, %v963
  %v965 = vrot.slane %v960, %v964
  %v967 = vadd.f32 %v956, %v965
  %v968 = vadd.f32 %v957, %v965
  %v969 = vadd.f32 %v958, %v965
  %v970 = vadd.f32 %v959, %v965
  %vm971 = vcmp.gt.f32.partialorder %v967, 0.0
  %vm972 = vcmp.gt.f32.partialorder %v968, 0.0
  %vm973 = vcmp.gt.f32.partialorder %v969, 0.0
  %vm974 = vcmp.gt.f32.partialorder %v970, 0.0
  %v975 = vmul.f32 %v967, 1.442695
  %v976 = vpow.pop %v975
  %v977 = vmul.f32 %v968, 1.442695
  %v978 = vpow.pop %v977
  %v979 = vmul.f32 %v969, 1.442695
  %v980 = vpow.pop %v979
  %v981 = vmul.f32 %v970, 1.442695
  %v982 = vpow.pop %v981
  %v983 = vsub.f32 %v976, 1.0
  %v984 = vsub.f32 %v978, 1.0
  %v985 = vsub.f32 %v980, 1.0
  %v986 = vsub.f32 %v982, 1.0
  %v987 = vsel %vm971, %v967, %v983
  %v988 = vsel %vm972, %v968, %v984
  %v989 = vsel %vm973, %v969, %v985
  %v990 = vsel %vm974, %v970, %v986
  %v991 = vld [vmem:[%s10] sm:$0xff]
  %v992 = vld [vmem:[%s10 + $0x8] sm:$0xff]
  %v993 = vld [vmem:[%s10 + $0x10] sm:$0xff]
  %v994 = vld [vmem:[%s10 + $0x18] sm:$0xff]
  %v995 = vld [vmem:[%s10 + $0x20] sm:$0xff]
  %v996 = vld [vmem:[%s10 + $0x28] sm:$0xff]
  %v997 = vld [vmem:[%s10 + $0x30] sm:$0xff]
  %v998 = vld [vmem:[%s10 + $0x38] sm:$0xff]
  %v1000 = vsel %vm227, %v987, 0
  %v1003 = vsel %vm227, %v988, 0
  %v1006 = vsel %vm227, %v989, 0
  %v1009 = vsel %vm227, %v990, 0
  %1011 = vmatprep.subr.mxu0 0.0
  %1012 = vmatpush1.msra.mxu0 %v991
  %1013 = vmatprep.subr.mxu0 0.0
  %1014 = vmatpush1.msra.mxu0 %v992
  %1015 = vmatprep.subr.mxu0 0.0
  %1016 = vmatpush1.msra.mxu0 %v993
  %1017 = vmatprep.subr.mxu0 0.0
  %1018 = vmatpush1.msra.mxu0 %v994
  %1019 = vmatprep.subr.mxu0 0.0
  %1020 = vmatpush1.msra.mxu0 %v995
  %1021 = vmatprep.subr.mxu0 0.0
  %1022 = vmatpush1.msra.mxu0 %v996
  %1023 = vmatprep.subr.mxu0 0.0
  %1024 = vmatpush1.msra.mxu0 %v997
  %1025 = vmatprep.subr.mxu0 0.0
  %1026 = vmatpush1.msra.mxu0 %v998
  %1027 = vmatprep.subr.mxu0 0.0
  %1028 = vmatpush1.msra.mxu0 0.0
  %1029 = vmatprep.subr.mxu0 0.0
  %1030 = vmatpush1.msra.mxu0 0.0
  %1031 = vmatprep.subr.mxu0 0.0
  %1032 = vmatpush1.msra.mxu0 0.0
  %1033 = vmatprep.subr.mxu0 0.0
  %1034 = vmatpush1.msra.mxu0 0.0
  %1035 = vmatprep.subr.mxu0 0.0
  %1036 = vmatpush1.msra.mxu0 0.0
  %1037 = vmatprep.subr.mxu0 0.0
  %1038 = vmatpush1.msra.mxu0 0.0
  %1039 = vmatprep.subr.mxu0 0.0
  %1040 = vmatpush1.msra.mxu0 0.0
  %1041 = vmatprep.subr.mxu0 0.0
  %1042 = vmatpush1.msra.mxu0 0.0
  %1043 = vmatprep.subr.mxu0 0.0
  %1044 = vmatpush1.msra.mxu0 0.0
  %1045 = vmatprep.subr.mxu0 0.0
  %1046 = vmatpush1.msra.mxu0 0.0
  %1047 = vmatprep.subr.mxu0 0.0
  %1048 = vmatpush1.msra.mxu0 0.0
  %1049 = vmatprep.subr.mxu0 0.0
  %1050 = vmatpush1.msra.mxu0 0.0
  %1051 = vmatprep.subr.mxu0 0.0
  %1052 = vmatpush1.msra.mxu0 0.0
  %1053 = vmatprep.subr.mxu0 0.0
  %1054 = vmatpush1.msra.mxu0 0.0
  %1055 = vmatprep.subr.mxu0 0.0
  %1056 = vmatpush1.msra.mxu0 0.0
  %1057 = vmatprep.subr.mxu0 0.0
  %1058 = vmatpush1.msra.mxu0 0.0
  %1059 = vmatprep.subr.mxu0 0.0
  %1060 = vmatpush1.msra.mxu0 0.0
  %1061 = vmatprep.subr.mxu0 0.0
  %1062 = vmatpush1.msra.mxu0 0.0
  %1063 = vmatprep.subr.mxu0 0.0
  %1064 = vmatpush1.msra.mxu0 0.0
  %1065 = vmatprep.subr.mxu0 0.0
  %1066 = vmatpush1.msra.mxu0 0.0
  %1067 = vmatprep.subr.mxu0 0.0
  %1068 = vmatpush1.msra.mxu0 0.0
  %1069 = vmatprep.subr.mxu0 0.0
  %1070 = vmatpush1.msra.mxu0 0.0
  %1071 = vmatprep.subr.mxu0 0.0
  %1072 = vmatpush1.msra.mxu0 0.0
  %1073 = vmatprep.subr.mxu0 0.0
  %1074 = vmatpush1.msra.mxu0 0.0
  %1075 = vmatprep.mubr.f32.mxu0 0.0
  %1076 = vmatmul.mubr.f32.gmra.mrb[0].mxu0 %v1000
  %v1077 = vpop.f32.mrb[0].mxu0
  %v1078 = vadd.f32 0.0, %v1077
  %v1079 = vpop.f32.mrb[0].mxu0
  %1080 = vmatprep.mubr.f32.mxu0 0.0
  %1081 = vmatmul.mubr.f32.gmra.mrb[0].mxu0 %v1003
  %v1082 = vpop.f32.mrb[0].mxu0
  %v1083 = vadd.f32 0.0, %v1082
  %v1084 = vpop.f32.mrb[0].mxu0
  %1085 = vmatprep.mubr.f32.mxu0 0.0
  %1086 = vmatmul.mubr.f32.gmra.mrb[0].mxu0 %v1006
  %v1087 = vpop.f32.mrb[0].mxu0
  %v1088 = vadd.f32 0.0, %v1087
  %v1089 = vpop.f32.mrb[0].mxu0
  %1090 = vmatprep.mubr.f32.mxu0 0.0
  %1091 = vmatmul.mubr.f32.gmra.mrb[0].mxu0 %v1009
  %v1092 = vpop.f32.mrb[0].mxu0
  %v1093 = vadd.f32 0.0, %v1092
  %v1094 = vpop.f32.mrb[0].mxu0
  %1095 = vdwg.mxu0
  %v1096 = vld [vmem:[%s12] sm:$0xf]
  %vm1097 = vcmask 31744
  %v1099 = vsel %vm1097, %v1078, 0
  %v1102 = vsel %vm1097, %v1083, 0
  %v1105 = vsel %vm1097, %v1088, 0
  %v1108 = vsel %vm1097, %v1093, 0
  %vm1110 = vcmask 1043456
  %v1112 = vsel %vm1110, %v1096, 0
  %1114 = vmatprep.subr.mxu0 0.0
  %1115 = vmatpush1.msra.mxu0 %v1112
  %1116 = vmatprep.subr.mxu0 0.0
  %1117 = vmatpush1.msra.mxu0 0.0
  %1118 = vmatprep.subr.mxu0 0.0
  %1119 = vmatpush1.msra.mxu0 0.0
  %1120 = vmatprep.subr.mxu0 0.0
  %1121 = vmatpush1.msra.mxu0 0.0
  %1122 = vmatprep.subr.mxu0 0.0
  %1123 = vmatpush1.msra.mxu0 0.0
  %1124 = vmatprep.subr.mxu0 0.0
  %1125 = vmatpush1.msra.mxu0 0.0
  %1126 = vmatprep.subr.mxu0 0.0
  %1127 = vmatpush1.msra.mxu0 0.0
  %1128 = vmatprep.subr.mxu0 0.0
  %1129 = vmatpush1.msra.mxu0 0.0
  %1130 = vmatprep.subr.mxu0 0.0
  %1131 = vmatpush1.msra.mxu0 0.0
  %1132 = vmatprep.subr.mxu0 0.0
  %1133 = vmatpush1.msra.mxu0 0.0
  %1134 = vmatprep.subr.mxu0 0.0
  %1135 = vmatpush1.msra.mxu0 0.0
  %1136 = vmatprep.subr.mxu0 0.0
  %1137 = vmatpush1.msra.mxu0 0.0
  %1138 = vmatprep.subr.mxu0 0.0
  %1139 = vmatpush1.msra.mxu0 0.0
  %1140 = vmatprep.subr.mxu0 0.0
  %1141 = vmatpush1.msra.mxu0 0.0
  %1142 = vmatprep.subr.mxu0 0.0
  %1143 = vmatpush1.msra.mxu0 0.0
  %1144 = vmatprep.subr.mxu0 0.0
  %1145 = vmatpush1.msra.mxu0 0.0
  %1146 = vmatprep.subr.mxu0 0.0
  %1147 = vmatpush1.msra.mxu0 0.0
  %1148 = vmatprep.subr.mxu0 0.0
  %1149 = vmatpush1.msra.mxu0 0.0
  %1150 = vmatprep.subr.mxu0 0.0
  %1151 = vmatpush1.msra.mxu0 0.0
  %1152 = vmatprep.subr.mxu0 0.0
  %1153 = vmatpush1.msra.mxu0 0.0
  %1154 = vmatprep.subr.mxu0 0.0
  %1155 = vmatpush1.msra.mxu0 0.0
  %1156 = vmatprep.subr.mxu0 0.0
  %1157 = vmatpush1.msra.mxu0 0.0
  %1158 = vmatprep.subr.mxu0 0.0
  %1159 = vmatpush1.msra.mxu0 0.0
  %1160 = vmatprep.subr.mxu0 0.0
  %1161 = vmatpush1.msra.mxu0 0.0
  %1162 = vmatprep.subr.mxu0 0.0
  %1163 = vmatpush1.msra.mxu0 0.0
  %1164 = vmatprep.subr.mxu0 0.0
  %1165 = vmatpush1.msra.mxu0 0.0
  %1166 = vmatprep.subr.mxu0 0.0
  %1167 = vmatpush1.msra.mxu0 0.0
  %1168 = vmatprep.subr.mxu0 0.0
  %1169 = vmatpush1.msra.mxu0 0.0
  %1170 = vmatprep.subr.mxu0 0.0
  %1171 = vmatpush1.msra.mxu0 0.0
  %1172 = vmatprep.subr.mxu0 0.0
  %1173 = vmatpush1.msra.mxu0 0.0
  %1174 = vmatprep.subr.mxu0 0.0
  %1175 = vmatpush1.msra.mxu0 0.0
  %1176 = vmatprep.subr.mxu0 0.0
  %1177 = vmatpush1.msra.mxu0 0.0
  %1178 = vmatprep.mubr.f32.mxu0 0.0
  %1179 = vmatmul.mubr.f32.gmra.mrb[0].mxu0 %v1099
  %v1180 = vpop.f32.mrb[0].mxu0
  %v1181 = vadd.f32 0.0, %v1180
  %v1182 = vpop.f32.mrb[0].mxu0
  %1183 = vmatprep.mubr.f32.mxu0 0.0
  %1184 = vmatmul.mubr.f32.gmra.mrb[0].mxu0 %v1102
  %v1185 = vpop.f32.mrb[0].mxu0
  %v1186 = vadd.f32 0.0, %v1185
  %v1187 = vpop.f32.mrb[0].mxu0
  %1188 = vmatprep.mubr.f32.mxu0 0.0
  %1189 = vmatmul.mubr.f32.gmra.mrb[0].mxu0 %v1105
  %v1190 = vpop.f32.mrb[0].mxu0
  %v1191 = vadd.f32 0.0, %v1190
  %v1192 = vpop.f32.mrb[0].mxu0
  %1193 = vmatprep.mubr.f32.mxu0 0.0
  %1194 = vmatmul.mubr.f32.gmra.mrb[0].mxu0 %v1108
  %v1195 = vpop.f32.mrb[0].mxu0
  %v1196 = vadd.f32 0.0, %v1195
  %v1197 = vpop.f32.mrb[0].mxu0
  %1198 = vdwg.mxu0
  %v1199 = vld [vmem:[%s11] sm:$0x1]
  %v1201 = vsel %vm1097, %v1199, 0
  %1203 = vmatprep.subr.mxu0 0.0
  %1204 = vmatpush1.xpose.msra.mxu0 %v1099
  %1205 = vmatprep.subr.mxu0 0.0
  %1206 = vmatpush1.xpose.msra.mxu0 %v1102
  %1207 = vmatprep.subr.mxu0 0.0
  %1208 = vmatpush1.xpose.msra.mxu0 %v1105
  %1209 = vmatprep.subr.mxu0 0.0
  %1210 = vmatpush1.xpose.msra.mxu0 %v1108
  %1211 = vmatprep.subr.mxu0 0.0
  %1212 = vmatpush1.xpose.msra.mxu0 0.0
  %1213 = vmatprep.subr.mxu0 0.0
  %1214 = vmatpush1.xpose.msra.mxu0 0.0
  %1215 = vmatprep.subr.mxu0 0.0
  %1216 = vmatpush1.xpose.msra.mxu0 0.0
  %1217 = vmatprep.subr.mxu0 0.0
  %1218 = vmatpush1.xpose.msra.mxu0 0.0
  %1219 = vmatprep.subr.mxu0 0.0
  %1220 = vmatpush1.xpose.msra.mxu0 0.0
  %1221 = vmatprep.subr.mxu0 0.0
  %1222 = vmatpush1.xpose.msra.mxu0 0.0
  %1223 = vmatprep.subr.mxu0 0.0
  %1224 = vmatpush1.xpose.msra.mxu0 0.0
  %1225 = vmatprep.subr.mxu0 0.0
  %1226 = vmatpush1.xpose.msra.mxu0 0.0
  %1227 = vmatprep.subr.mxu0 0.0
  %1228 = vmatpush1.xpose.msra.mxu0 0.0
  %1229 = vmatprep.subr.mxu0 0.0
  %1230 = vmatpush1.xpose.msra.mxu0 0.0
  %1231 = vmatprep.subr.mxu0 0.0
  %1232 = vmatpush1.xpose.msra.mxu0 0.0
  %1233 = vmatprep.subr.mxu0 0.0
  %1234 = vmatpush1.xpose.msra.mxu0 0.0
  %1235 = vmatprep.subr.mxu0 0.0
  %1236 = vmatpush1.xpose.msra.mxu0 0.0
  %1237 = vmatprep.subr.mxu0 0.0
  %1238 = vmatpush1.xpose.msra.mxu0 0.0
  %1239 = vmatprep.subr.mxu0 0.0
  %1240 = vmatpush1.xpose.msra.mxu0 0.0
  %1241 = vmatprep.subr.mxu0 0.0
  %1242 = vmatpush1.xpose.msra.mxu0 0.0
  %1243 = vmatprep.subr.mxu0 0.0
  %1244 = vmatpush1.xpose.msra.mxu0 0.0
  %1245 = vmatprep.subr.mxu0 0.0
  %1246 = vmatpush1.xpose.msra.mxu0 0.0
  %1247 = vmatprep.subr.mxu0 0.0
  %1248 = vmatpush1.xpose.msra.mxu0 0.0
  %1249 = vmatprep.subr.mxu0 0.0
  %1250 = vmatpush1.xpose.msra.mxu0 0.0
  %1251 = vmatprep.subr.mxu0 0.0
  %1252 = vmatpush1.xpose.msra.mxu0 0.0
  %1253 = vmatprep.subr.mxu0 0.0
  %1254 = vmatpush1.xpose.msra.mxu0 0.0
  %1255 = vmatprep.subr.mxu0 0.0
  %1256 = vmatpush1.xpose.msra.mxu0 0.0
  %1257 = vmatprep.subr.mxu0 0.0
  %1258 = vmatpush1.xpose.msra.mxu0 0.0
  %1259 = vmatprep.subr.mxu0 0.0
  %1260 = vmatpush1.xpose.msra.mxu0 0.0
  %1261 = vmatprep.subr.mxu0 0.0
  %1262 = vmatpush1.xpose.msra.mxu0 0.0
  %1263 = vmatprep.subr.mxu0 0.0
  %1264 = vmatpush1.xpose.msra.mxu0 0.0
  %1265 = vmatprep.subr.mxu0 0.0
  %1266 = vmatpush1.xpose.msra.mxu0 0.0
  %1267 = vmatprep.mubr.f32.mxu0 0.0
  %1268 = vmatmul.mubr.f32.gmra.mrb[0].mxu0 %v1201
  %v1269 = vpop.f32.mrb[0].mxu0
  %v1270 = vadd.f32 0.0, %v1269
  %v1271 = vpop.f32.mrb[0].mxu0
  %1272 = vdwg.mxu0
  %1274 = vset.pattern.permute.xlu0 0
  %1275 = vperm.xlu0 %1274, %v1181
  %v1276 = vpop.permute.xlu0 %1275
  %1279 = vset.pattern.permute.xlu0 0
  %1280 = vperm.xlu0 %1279, %v1186
  %v1281 = vpop.permute.xlu0 %1280
  %1284 = vset.pattern.permute.xlu0 0
  %1285 = vperm.xlu0 %1284, %v1191
  %v1286 = vpop.permute.xlu0 %1285
  %1289 = vset.pattern.permute.xlu0 0
  %1290 = vperm.xlu0 %1289, %v1196
  %v1291 = vpop.permute.xlu0 %1290
  %v1293 = vlaneseq
  %v1294 = vshrl.u32 %v1293, 7
  %v1295 = vsub.s32 0, %v1294
  %v1296 = vrot.slane %v1270, %v1295
  %v1297 = vadd.f32 %v1276, %v1296
  %v1298 = vadd.f32 %v1281, %v1296
  %v1299 = vadd.f32 %v1286, %v1296
  %v1300 = vadd.f32 %v1291, %v1296
  %vm1301 = vcmp.gt.f32.partialorder %v1297, 0.0
  %vm1302 = vcmp.gt.f32.partialorder %v1298, 0.0
  %vm1303 = vcmp.gt.f32.partialorder %v1299, 0.0
  %vm1304 = vcmp.gt.f32.partialorder %v1300, 0.0
  %v1305 = vmul.f32 %v1297, 0.2
  %v1306 = vmul.f32 %v1298, 0.2
  %v1307 = vmul.f32 %v1299, 0.2
  %v1308 = vmul.f32 %v1300, 0.2
  %v1309 = vsel %vm1301, %v1297, %v1305
  %v1310 = vsel %vm1302, %v1298, %v1306
  %v1311 = vsel %vm1303, %v1299, %v1307
  %v1312 = vsel %vm1304, %v1300, %v1308
  %vm1313 = vcmask 261120
  %v1314 = vsel %vm1313, %v1309, -inf
  %1315 = vmax.xlane.f32.xlu0 %v1314
  %v1316 = vpop.xlane.xlu0 %1315
  %v1317 = vsel %vm1313, %v1310, -inf
  %1318 = vmax.xlane.f32.xlu0 %v1317
  %v1319 = vpop.xlane.xlu0 %1318
  %v1320 = vsel %vm1313, %v1311, -inf
  %1321 = vmax.xlane.f32.xlu0 %v1320
  %v1322 = vpop.xlane.xlu0 %1321
  %v1323 = vsel %vm1313, %v1312, -inf
  %1324 = vmax.xlane.f32.xlu0 %v1323
  %v1325 = vpop.xlane.xlu0 %1324
  %v1326 = vsub.f32 %v1309, %v1316
  %v1327 = vsub.f32 %v1310, %v1319
  %v1328 = vsub.f32 %v1311, %v1322
  %v1329 = vsub.f32 %v1312, %v1325
  %v1330 = vmul.f32 %v1326, 1.442695
  %v1331 = vpow.pop %v1330
  %v1332 = vmul.f32 %v1327, 1.442695
  %v1333 = vpow.pop %v1332
  %v1334 = vmul.f32 %v1328, 1.442695
  %v1335 = vpow.pop %v1334
  %v1336 = vmul.f32 %v1329, 1.442695
  %v1337 = vpow.pop %v1336
  %v1338 = vmul.f32 %v1331, %v51
  %v1339 = vmul.f32 %v1333, %v52
  %v1340 = vmul.f32 %v1335, %v53
  %v1341 = vmul.f32 %v1337, %v54
  %v1342 = vsel %vm1313, %v1338, 0.0
  %1343 = vadd.xlane.f32.xlu0 %v1342
  %v1344 = vpop.xlane.xlu0 %1343
  %v1345 = vsel %vm1313, %v1339, 0.0
  %1346 = vadd.xlane.f32.xlu0 %v1345
  %v1347 = vpop.xlane.xlu0 %1346
  %v1348 = vsel %vm1313, %v1340, 0.0
  %1349 = vadd.xlane.f32.xlu0 %v1348
  %v1350 = vpop.xlane.xlu0 %1349
  %v1351 = vsel %vm1313, %v1341, 0.0
  %1352 = vadd.xlane.f32.xlu0 %v1351
  %v1353 = vpop.xlane.xlu0 %1352
  %v1355 = vsel %vm1313, %v1338, 0
  %v1358 = vsel %vm1313, %v1339, 0
  %v1361 = vsel %vm1313, %v1340, 0
  %v1364 = vsel %vm1313, %v1341, 0
  %1366 = vmatprep.subr.mxu0 0.0
  %1367 = vmatpush1.msra.mxu0 %v1078
  %1368 = vmatprep.subr.mxu0 0.0
  %1369 = vmatpush1.msra.mxu0 %v1083
  %1370 = vmatprep.subr.mxu0 0.0
  %1371 = vmatpush1.msra.mxu0 %v1088
  %1372 = vmatprep.subr.mxu0 0.0
  %1373 = vmatpush1.msra.mxu0 %v1093
  %1374 = vmatprep.subr.mxu0 0.0
  %1375 = vmatpush1.msra.mxu0 0.0
  %1376 = vmatprep.subr.mxu0 0.0
  %1377 = vmatpush1.msra.mxu0 0.0
  %1378 = vmatprep.subr.mxu0 0.0
  %1379 = vmatpush1.msra.mxu0 0.0
  %1380 = vmatprep.subr.mxu0 0.0
  %1381 = vmatpush1.msra.mxu0 0.0
  %1382 = vmatprep.subr.mxu0 0.0
  %1383 = vmatpush1.msra.mxu0 0.0
  %1384 = vmatprep.subr.mxu0 0.0
  %1385 = vmatpush1.msra.mxu0 0.0
  %1386 = vmatprep.subr.mxu0 0.0
  %1387 = vmatpush1.msra.mxu0 0.0
  %1388 = vmatprep.subr.mxu0 0.0
  %1389 = vmatpush1.msra.mxu0 0.0
  %1390 = vmatprep.subr.mxu0 0.0
  %1391 = vmatpush1.msra.mxu0 0.0
  %1392 = vmatprep.subr.mxu0 0.0
  %1393 = vmatpush1.msra.mxu0 0.0
  %1394 = vmatprep.subr.mxu0 0.0
  %1395 = vmatpush1.msra.mxu0 0.0
  %1396 = vmatprep.subr.mxu0 0.0
  %1397 = vmatpush1.msra.mxu0 0.0
  %1398 = vmatprep.subr.mxu0 0.0
  %1399 = vmatpush1.msra.mxu0 0.0
  %1400 = vmatprep.subr.mxu0 0.0
  %1401 = vmatpush1.msra.mxu0 0.0
  %1402 = vmatprep.subr.mxu0 0.0
  %1403 = vmatpush1.msra.mxu0 0.0
  %1404 = vmatprep.subr.mxu0 0.0
  %1405 = vmatpush1.msra.mxu0 0.0
  %1406 = vmatprep.subr.mxu0 0.0
  %1407 = vmatpush1.msra.mxu0 0.0
  %1408 = vmatprep.subr.mxu0 0.0
  %1409 = vmatpush1.msra.mxu0 0.0
  %1410 = vmatprep.subr.mxu0 0.0
  %1411 = vmatpush1.msra.mxu0 0.0
  %1412 = vmatprep.subr.mxu0 0.0
  %1413 = vmatpush1.msra.mxu0 0.0
  %1414 = vmatprep.subr.mxu0 0.0
  %1415 = vmatpush1.msra.mxu0 0.0
  %1416 = vmatprep.subr.mxu0 0.0
  %1417 = vmatpush1.msra.mxu0 0.0
  %1418 = vmatprep.subr.mxu0 0.0
  %1419 = vmatpush1.msra.mxu0 0.0
  %1420 = vmatprep.subr.mxu0 0.0
  %1421 = vmatpush1.msra.mxu0 0.0
  %1422 = vmatprep.subr.mxu0 0.0
  %1423 = vmatpush1.msra.mxu0 0.0
  %1424 = vmatprep.subr.mxu0 0.0
  %1425 = vmatpush1.msra.mxu0 0.0
  %1426 = vmatprep.subr.mxu0 0.0
  %1427 = vmatpush1.msra.mxu0 0.0
  %1428 = vmatprep.subr.mxu0 0.0
  %1429 = vmatpush1.msra.mxu0 0.0
  %1430 = vmatprep.mubr.f32.mxu0 0.0
  %1431 = vmatmul.mubr.f32.gmra.mrb[0].mxu0 %v1355
  %v1432 = vpop.f32.mrb[0].mxu0
  %v1433 = vadd.f32 0.0, %v1432
  %v1434 = vpop.f32.mrb[0].mxu0
  %1435 = vmatprep.mubr.f32.mxu0 0.0
  %1436 = vmatmul.mubr.f32.gmra.mrb[0].mxu0 %v1358
  %v1437 = vpop.f32.mrb[0].mxu0
  %v1438 = vadd.f32 0.0, %v1437
  %v1439 = vpop.f32.mrb[0].mxu0
  %1440 = vmatprep.mubr.f32.mxu0 0.0
  %1441 = vmatmul.mubr.f32.gmra.mrb[0].mxu0 %v1361
  %v1442 = vpop.f32.mrb[0].mxu0
  %v1443 = vadd.f32 0.0, %v1442
  %v1444 = vpop.f32.mrb[0].mxu0
  %1445 = vmatprep.mubr.f32.mxu0 0.0
  %1446 = vmatmul.mubr.f32.gmra.mrb[0].mxu0 %v1364
  %v1447 = vpop.f32.mrb[0].mxu0
  %v1448 = vadd.f32 0.0, %v1447
  %v1449 = vpop.f32.mrb[0].mxu0
  %1450 = vdwg.mxu0
  %v1451 = vrcp.pop %v1344
  %v1452 = vrcp.pop %v1347
  %v1453 = vrcp.pop %v1350
  %v1454 = vrcp.pop %v1353
  %v1455 = vmul.f32 %v1433, %v1451
  %v1456 = vmul.f32 %v1438, %v1452
  %v1457 = vmul.f32 %v1443, %v1453
  %v1458 = vmul.f32 %v1448, %v1454
  %v1459 = vld [vmem:[%s13] sm:$0x1]
  %v1461 = vlaneseq
  %v1462 = vshrl.u32 %v1461, 7
  %v1463 = vsub.s32 0, %v1462
  %v1464 = vrot.slane %v1459, %v1463
  %v1466 = vadd.f32 %v1455, %v1464
  %v1467 = vadd.f32 %v1456, %v1464
  %v1468 = vadd.f32 %v1457, %v1464
  %v1469 = vadd.f32 %v1458, %v1464
  %v1470 = vsel %vm1097, %v1466, -inf
  %1471 = vmax.xlane.f32.xlu0 %v1470
  %v1472 = vpop.xlane.xlu0 %1471
  %v1473 = vsel %vm1097, %v1467, -inf
  %1474 = vmax.xlane.f32.xlu0 %v1473
  %v1475 = vpop.xlane.xlu0 %1474
  %v1476 = vsel %vm1097, %v1468, -inf
  %1477 = vmax.xlane.f32.xlu0 %v1476
  %v1478 = vpop.xlane.xlu0 %1477
  %v1479 = vsel %vm1097, %v1469, -inf
  %1480 = vmax.xlane.f32.xlu0 %v1479
  %v1481 = vpop.xlane.xlu0 %1480
  %v1482 = vsub.f32 %v1466, %v1472
  %v1483 = vsub.f32 %v1467, %v1475
  %v1484 = vsub.f32 %v1468, %v1478
  %v1485 = vsub.f32 %v1469, %v1481
  %v1486 = vmul.f32 %v1482, 1.442695
  %v1487 = vpow.pop %v1486
  %v1488 = vmul.f32 %v1483, 1.442695
  %v1489 = vpow.pop %v1488
  %v1490 = vmul.f32 %v1484, 1.442695
  %v1491 = vpow.pop %v1490
  %v1492 = vmul.f32 %v1485, 1.442695
  %v1493 = vpow.pop %v1492
  %v1494 = vsel %vm1097, %v1487, 0.0
  %1495 = vadd.xlane.f32.xlu0 %v1494
  %v1496 = vpop.xlane.xlu0 %1495
  %v1497 = vsel %vm1097, %v1489, 0.0
  %1498 = vadd.xlane.f32.xlu0 %v1497
  %v1499 = vpop.xlane.xlu0 %1498
  %v1500 = vsel %vm1097, %v1491, 0.0
  %1501 = vadd.xlane.f32.xlu0 %v1500
  %v1502 = vpop.xlane.xlu0 %1501
  %v1503 = vsel %vm1097, %v1493, 0.0
  %1504 = vadd.xlane.f32.xlu0 %v1503
  %v1505 = vpop.xlane.xlu0 %1504
  %v1506 = vlog2.pop %v1496
  %v1507 = vmul.f32 %v1506, 0.6931472
  %v1508 = vlog2.pop %v1499
  %v1509 = vmul.f32 %v1508, 0.6931472
  %v1510 = vlog2.pop %v1502
  %v1511 = vmul.f32 %v1510, 0.6931472
  %v1512 = vlog2.pop %v1505
  %v1513 = vmul.f32 %v1512, 0.6931472
  %v1514 = vsub.f32 %v1482, %v1507
  %v1515 = vsub.f32 %v1483, %v1509
  %v1516 = vsub.f32 %v1484, %v1511
  %v1517 = vsub.f32 %v1485, %v1513
  %1518 = vst.msk [vmem:[%s14] sm:$0xff] %vm1097, %v1514
  %1519 = vst.msk [vmem:[%s14 + $0x8] sm:$0xff] %vm1097, %v1515
  %1520 = vst.msk [vmem:[%s14 + $0x10] sm:$0xff] %vm1097, %v1516
  %1521 = vst.msk [vmem:[%s14 + $0x18] sm:$0xff] %vm1097, %v1517
  // Predicated region
  $region58: #{tpu_custom_call.1} parent=0 // pred_check
    _
  $region59: #{tpu_custom_call.1} parent=0 // pred_check_branch
    %1523 = sbr.rel (0) target = $region61
  $region60: #{tpu_custom_call.1} parent=0 // pred_region
    _
  $region61: #{tpu_custom_call.1} parent=0 // pred_fallthru
    _
  // Predicated region
  $region62: #{tpu_custom_call.1} parent=0 // pred_check
    _
  $region63: #{tpu_custom_call.1} parent=0 // pred_check_branch
    %1525 = sbr.rel (0) target = $region65
  $region64: #{tpu_custom_call.1} parent=0 // pred_region
    _
  $region65: #{tpu_custom_call.1} parent=0 // pred_fallthru
    _

</llo_original>
